<compile_context>
chip_gen: v7x
topology: tpu7x:2x2x1
jax: 0.10.0
libtpu: 0.0.40
codegen_flags: <defaults>
</compile_context>

<pallas_src>
import functools
import math

import jax
import jax.numpy as jnp
import numpy as np
from jax import lax
from jax.experimental import pallas as pl
from jax.experimental.pallas import tpu as pltpu


def _layer_norm(y, gamma, beta, eps):
    mu = jnp.mean(y, axis=-1, keepdims=True)
    var = jnp.mean((y - mu) ** 2, axis=-1, keepdims=True)
    return (y - mu) * lax.rsqrt(var + eps) * gamma + beta


def encoder_layer_kernel(x_ref, rel_ref,
                         wq_ref, bq_ref, wkv_ref, bkv_ref,
                         wo_ref, bo_ref, g1_ref, be1_ref,
                         w1_ref, b1_ref, w2_ref, b2_ref,
                         g2_ref, be2_ref,
                         o_ref,
                         k_scr, v_scr,
                         *, num_heads, q_tile, eps):
    f32 = jnp.float32
    bf16 = jnp.bfloat16

    S, D = x_ref.shape[1], x_ref.shape[2]
    dk = D // num_heads
    tq = q_tile
    num_q_tiles = S // tq
    qi = pl.program_id(1)

    # ---- K/V projection: once per batch row (q-tile axis is innermost/arbitrary,
    #      scratch persists across q tiles of the same batch row) ----
    @pl.when(qi == 0)
    def _():
        x_full = x_ref[0].astype(bf16)                                   # (S, D)
        kv = jnp.dot(x_full, wkv_ref[...], preferred_element_type=f32) + bkv_ref[...]
        k_scr[...] = kv[:, :D].astype(bf16)
        v_scr[...] = kv[:, D:].astype(bf16)

    # ---- Q projection for this query tile (1/sqrt(dk) pre-folded into Wq/bq) ----
    if num_q_tiles == 1:
        x_tile = x_ref[0]                                                # (tq, D) f32
    else:
        q_start = pl.multiple_of(qi * tq, tq)
        x_tile = x_ref[0, pl.ds(q_start, tq), :]
    q = jnp.dot(x_tile.astype(bf16), wq_ref[...],
                preferred_element_type=f32) + bq_ref[...]                # (tq, D)

    k_all = k_scr[...]                                                   # (S, D) bf16
    v_all = v_scr[...]
    rel_tab = rel_ref[...]                                               # (R_pad, dk) bf16

    nt = (((1,), (1,)), ((), ()))   # contract minor dims: q @ k^T without a transpose op

    # ---- attention: static per-head loop, head merge folded into Wo slices ----
    acc = jnp.zeros((tq, D), f32) + bo_ref[...]
    for h in range(num_heads):
        cols = slice(h * dk, (h + 1) * dk)
        q_h = q[:, cols].astype(bf16)                                    # (tq, dk)
        k_h = k_all[:, cols]                                             # (S, dk)
        v_h = v_all[:, cols]

        content = lax.dot_general(q_h, k_h, nt, preferred_element_type=f32)      # (tq, S)
        rel_all = lax.dot_general(q_h, rel_tab, nt, preferred_element_type=f32)  # (tq, R_pad)

        # Shaw rel-E relative shift (standard clipped id pattern):
        #   rel[r, j] = rel_all[r, (S - 1) + j - (qi*tq + r)]
        # Row r is rotated by r on the XLU (strided lane rotate); the fixed
        # window [S-1, 2S-1) never needs wrap-around, so the slice is exact.
        shifted = pltpu.roll(rel_all, shift=0, axis=1, stride=1, stride_axis=0)
        if num_q_tiles > 1:
            shifted = pltpu.roll(shifted, qi * tq, axis=1)               # tile offset
        rel = shifted[:, S - 1:2 * S - 1]                                # (tq, S)

        logits = content + rel                                           # scale pre-folded in q
        m = jnp.max(logits, axis=-1, keepdims=True)
        e = jnp.exp(logits - m)
        denom = jnp.sum(e, axis=-1, keepdims=True)
        probs = (e * pl.reciprocal(denom, approx=True)).astype(bf16)

        attn_h = jnp.dot(probs, v_h, preferred_element_type=f32)         # (tq, dk)
        acc = acc + jnp.dot(attn_h.astype(bf16), wo_ref[cols, :],
                            preferred_element_type=f32)                  # += attn_h @ Wo_h

    # dropout1 -> identity (eval)
    ff_in = _layer_norm(x_tile + acc, g1_ref[...], be1_ref[...], eps)

    # ---- feed forward: bf16 MXU matmuls, f32 bias / ReLU ----
    h1 = jnp.dot(ff_in.astype(bf16), w1_ref[...], preferred_element_type=f32) + b1_ref[...]
    h1 = jnp.maximum(h1, 0.0)
    ff_out = jnp.dot(h1.astype(bf16), w2_ref[...], preferred_element_type=f32) + b2_ref[...]

    # dropout2 -> identity (eval)
    out = _layer_norm(ff_in + ff_out, g2_ref[...], be2_ref[...], eps)
    o_ref[0] = out.astype(o_ref.dtype)


def extended_encoder_layer(x, relative_ids, rel_table, params, num_heads, q_tile=256):
    # `relative_ids` is accepted for API parity with the PyTorch layer but the
    # kernel assumes the standard pattern ids[i, j] = clip(j - i + S - 1, 0, 2S - 2).
    del relative_ids
    B, S, D = x.shape
    dk = D // num_heads
    H = params["w1"].shape[1]
    R = rel_table.shape[0]
    assert R == 2 * S - 1, "kernel assumes the standard (2S-1)-entry relative table"
    bf16 = jnp.bfloat16

    tq = min(q_tile, S)                      # 256-aligned query tiles at realistic S
    assert S % tq == 0
    nq = S // tq

    # ---- host-side weight prep (done once, outside the kernel) ----
    scale = 1.0 / math.sqrt(dk)
    wq = (params["wq"] * scale).astype(bf16)                    # fold 1/sqrt(dk) into Q proj
    bq = params["bq"] * scale
    wkv = jnp.concatenate([params["wk"], params["wv"]], axis=1).astype(bf16)
    bkv = jnp.concatenate([params["bk"], params["bv"]], axis=1)
    # pad the relative table to a lane-dense width so the q x table matmul and
    # the strided roll are unmasked / 128-lane aligned (zero rows never read).
    r_pad = ((R + 127) // 128) * 128
    rel_tab = jnp.pad(rel_table.astype(bf16), ((0, r_pad - R), (0, 0)))

    def inv(shape):                                             # grid-invariant operand
        zeros = (0,) * len(shape)
        return pl.BlockSpec(shape, lambda b, qi: zeros)

    in_specs = [
        pl.BlockSpec((1, S, D), lambda b, qi: (b, 0, 0)),       # x: full seq, invariant over q tiles
        inv((r_pad, dk)),                                       # rel-E table (padded)
        inv((D, D)), inv((1, D)),                               # Wq (pre-scaled), bq
        inv((D, 2 * D)), inv((1, 2 * D)),                       # Wkv, bkv
        inv((D, D)), inv((1, D)),                               # Wo, bo
        inv((1, D)), inv((1, D)),                               # norm1 gamma, beta
        inv((D, H)), inv((1, H)),                               # ffn W1, b1
        inv((H, D)), inv((1, D)),                               # ffn W2, b2
        inv((1, D)), inv((1, D)),                               # norm2 gamma, beta
    ]

    # per-generation VMEM budget: double-buffered operand blocks + K/V scratch +
    # working-set slack, clamped to ~3/4 of physical VMEM (128 MiB v5e/v6e, 64 MiB v7x).
    operand_bytes = (4 * S * D                                   # x block (f32)
                     + 2 * r_pad * dk                            # rel table (bf16)
                     + 2 * (2 * D * D + 2 * D * D + D * H + H * D)   # bf16 weights
                     + 4 * (10 * D + 2 * D + H))                 # f32 biases / norm params
    out_bytes = 4 * tq * D
    scratch_bytes = 2 * 2 * S * D                                # K + V bf16 scratch
    need = 2 * (operand_bytes + out_bytes) + scratch_bytes + (8 << 20)
    try:
        phys = pltpu.get_tpu_info().vmem_capacity_bytes
    except Exception:  # pragma: no cover - conservative fallback
        phys = 64 << 20
    vmem_budget = int(min(max(need, 32 << 20), (phys * 3) // 4))

    kernel = functools.partial(encoder_layer_kernel, num_heads=num_heads,
                               q_tile=tq, eps=1e-6)
    # TODO(synk): at tiny D / S (like this harness) fold multiple batch rows into
    # one grid step for lane-dense output stores and fewer per-step overheads.
    return pl.pallas_call(
        kernel,
        out_shape=jax.ShapeDtypeStruct((B, S, D), x.dtype),
        grid_spec=pltpu.PrefetchScalarGridSpec(
            num_scalar_prefetch=0,
            grid=(B, nq),
            in_specs=in_specs,
            out_specs=pl.BlockSpec((1, tq, D), lambda b, qi: (b, qi, 0)),
            scratch_shapes=[
                pltpu.VMEM((S, D), bf16),    # K (full sequence, persists across q tiles)
                pltpu.VMEM((S, D), bf16),    # V
            ],
        ),
        compiler_params=pltpu.CompilerParams(
            # q-tile axis is "arbitrary": K/V scratch is filled at qi == 0 and
            # reused by the remaining q tiles of the same batch row.
            dimension_semantics=("parallel", "arbitrary"),
            vmem_limit_bytes=vmem_budget,
        ),
    )(x, rel_tab, wq, bq, wkv, bkv,
      params["wo"].astype(bf16), params["bo"],
      params["g1"], params["be1"],
      params["w1"].astype(bf16), params["b1"],
      params["w2"].astype(bf16), params["b2"],
      params["g2"], params["be2"])


# ------------------------- pure-JAX reference ---------------------------------
def reference(x, relative_ids, rel_table, params, num_heads):
    B, S, D = x.shape
    dk = D // num_heads
    scale = 1.0 / math.sqrt(dk)
    rel_gathered = rel_table[relative_ids]          # (S, S, dk)

    def ln(y, g, b):
        m = y.mean(-1, keepdims=True)
        v = ((y - m) ** 2).mean(-1, keepdims=True)
        return (y - m) / jnp.sqrt(v + 1e-6) * g + b

    q = x @ params["wq"] + params["bq"][0]
    k = x @ params["wk"] + params["bk"][0]
    v = x @ params["wv"] + params["bv"][0]
    qh = q.reshape(B, S, num_heads, dk).transpose(0, 2, 1, 3)
    kh = k.reshape(B, S, num_heads, dk).transpose(0, 2, 1, 3)
    vh = v.reshape(B, S, num_heads, dk).transpose(0, 2, 1, 3)
    content = jnp.einsum("bhid,bhjd->bhij", qh, kh)
    rel = jnp.einsum("bhid,ijd->bhij", qh, rel_gathered)
    attn = jax.nn.softmax((content + rel) * scale, axis=-1)
    o = jnp.einsum("bhij,bhjd->bhid", attn, vh).transpose(0, 2, 1, 3).reshape(B, S, D)
    a = o @ params["wo"] + params["bo"][0]
    ff_in = ln(x + a, params["g1"][0], params["be1"][0])
    h1 = jnp.maximum(ff_in @ params["w1"] + params["b1"][0], 0.0)
    ff_out = h1 @ params["w2"] + params["b2"][0]
    return ln(ff_in + ff_out, params["g2"][0], params["be2"][0])


# --------------------------------- main ----------------------------------------
def xavier_uniform(key, shape):
    fan_in, fan_out = shape
    bound = math.sqrt(6.0 / (fan_in + fan_out))
    return jax.random.uniform(key, shape, jnp.float32, -bound, bound)


if __name__ == "__main__":
    B, S, D, num_heads, H = 2, 8, 32, 4, 64
    dk = D // num_heads

    key = jax.random.PRNGKey(0)
    ks = jax.random.split(key, 12)

    params = dict(
        wq=xavier_uniform(ks[0], (D, D)), bq=jnp.zeros((1, D), jnp.float32),
        wk=xavier_uniform(ks[1], (D, D)), bk=jnp.zeros((1, D), jnp.float32),
        wv=xavier_uniform(ks[2], (D, D)), bv=jnp.zeros((1, D), jnp.float32),
        wo=xavier_uniform(ks[3], (D, D)), bo=jnp.zeros((1, D), jnp.float32),
        g1=jnp.ones((1, D), jnp.float32), be1=jnp.zeros((1, D), jnp.float32),
        w1=xavier_uniform(ks[4], (D, H)), b1=jnp.zeros((1, H), jnp.float32),
        w2=xavier_uniform(ks[5], (H, D)), b2=jnp.zeros((1, D), jnp.float32),
        g2=jnp.ones((1, D), jnp.float32), be2=jnp.zeros((1, D), jnp.float32),
    )

    # input + relative position ids (standard clipped pattern)
    x = jax.random.normal(ks[6], (B, S, D), jnp.float32)
    i_idx = jnp.arange(S)[:, None]
    j_idx = jnp.arange(S)[None, :]
    relative_ids = jnp.clip(j_idx - i_idx + (S - 1), 0, 2 * S - 2).astype(jnp.int32)
    rel_table = 0.02 * jax.random.normal(ks[7], (2 * S - 1, dk), jnp.float32)

    out = extended_encoder_layer(x, relative_ids, rel_table, params, num_heads)
    out = jax.block_until_ready(out)

    ref = reference(x, relative_ids, rel_table, params, num_heads)
    # bf16 MXU operands + approx reciprocal -> looser tolerance than pure f32.
    np.testing.assert_allclose(np.asarray(out), np.asarray(ref), rtol=5e-2, atol=5e-2)

    print("KERNEL_OK")
</pallas_src>

<mosaic_0001>
module attributes {stable_mosaic.version = 11 : i64} {
  func.func @encoder_layer_kernel(%arg0: i32, %arg1: i32, %arg2: memref<1x8x32xf32, #tpu.memory_space<vmem>>, %arg3: memref<128x8xbf16, #tpu.memory_space<vmem>>, %arg4: memref<32x32xbf16, #tpu.memory_space<vmem>>, %arg5: memref<1x32xf32, #tpu.memory_space<vmem>>, %arg6: memref<32x64xbf16, #tpu.memory_space<vmem>>, %arg7: memref<1x64xf32, #tpu.memory_space<vmem>>, %arg8: memref<32x32xbf16, #tpu.memory_space<vmem>>, %arg9: memref<1x32xf32, #tpu.memory_space<vmem>>, %arg10: memref<1x32xf32, #tpu.memory_space<vmem>>, %arg11: memref<1x32xf32, #tpu.memory_space<vmem>>, %arg12: memref<32x64xbf16, #tpu.memory_space<vmem>>, %arg13: memref<1x64xf32, #tpu.memory_space<vmem>>, %arg14: memref<64x32xbf16, #tpu.memory_space<vmem>>, %arg15: memref<1x32xf32, #tpu.memory_space<vmem>>, %arg16: memref<1x32xf32, #tpu.memory_space<vmem>>, %arg17: memref<1x32xf32, #tpu.memory_space<vmem>>, %arg18: memref<1x8x32xf32, #tpu.memory_space<vmem>>, %arg19: memref<8x32xbf16, #tpu.memory_space<vmem>>, %arg20: memref<8x32xbf16, #tpu.memory_space<vmem>>) attributes {dimension_semantics = [#tpu.dimension_semantics<parallel>, #tpu.dimension_semantics<arbitrary>], iteration_bounds = array<i64: 2, 1>, scalar_prefetch = 0 : i64, scratch_operands = 2 : i64, tpu.core_type = #tpu.core_type<tc>, window_params = [{transform_indices = @transform_0, window_bounds = array<i64: 1, 8, 32>}, {pipeline_mode = #tpu.pipeline_mode<synchronous>, transform_indices = @transform_1, window_bounds = array<i64: 128, 8>}, {pipeline_mode = #tpu.pipeline_mode<synchronous>, transform_indices = @transform_2, window_bounds = array<i64: 32, 32>}, {pipeline_mode = #tpu.pipeline_mode<synchronous>, transform_indices = @transform_3, window_bounds = array<i64: 1, 32>}, {pipeline_mode = #tpu.pipeline_mode<synchronous>, transform_indices = @transform_4, window_bounds = array<i64: 32, 64>}, {pipeline_mode = #tpu.pipeline_mode<synchronous>, transform_indices = @transform_5, window_bounds = array<i64: 1, 64>}, {pipeline_mode = #tpu.pipeline_mode<synchronous>, transform_indices = @transform_6, window_bounds = array<i64: 32, 32>}, {pipeline_mode = #tpu.pipeline_mode<synchronous>, transform_indices = @transform_7, window_bounds = array<i64: 1, 32>}, {pipeline_mode = #tpu.pipeline_mode<synchronous>, transform_indices = @transform_8, window_bounds = array<i64: 1, 32>}, {pipeline_mode = #tpu.pipeline_mode<synchronous>, transform_indices = @transform_9, window_bounds = array<i64: 1, 32>}, {pipeline_mode = #tpu.pipeline_mode<synchronous>, transform_indices = @transform_10, window_bounds = array<i64: 32, 64>}, {pipeline_mode = #tpu.pipeline_mode<synchronous>, transform_indices = @transform_11, window_bounds = array<i64: 1, 64>}, {pipeline_mode = #tpu.pipeline_mode<synchronous>, transform_indices = @transform_12, window_bounds = array<i64: 64, 32>}, {pipeline_mode = #tpu.pipeline_mode<synchronous>, transform_indices = @transform_13, window_bounds = array<i64: 1, 32>}, {pipeline_mode = #tpu.pipeline_mode<synchronous>, transform_indices = @transform_14, window_bounds = array<i64: 1, 32>}, {pipeline_mode = #tpu.pipeline_mode<synchronous>, transform_indices = @transform_15, window_bounds = array<i64: 1, 32>}, {transform_indices = @transform_16, window_bounds = array<i64: 1, 8, 32>}]} {
    %c0_i32 = arith.constant 0 : i32
    %0 = arith.cmpi eq, %arg1, %c0_i32 : i32
    %1 = arith.extui %0 : i1 to i32
    %c0_i32_0 = arith.constant 0 : i32
    %2 = arith.cmpi ne, %1, %c0_i32_0 : i32
    scf.if %2 {
      %c0_81 = arith.constant 0 : index
      %c0_82 = arith.constant 0 : index
      %c0_83 = arith.constant 0 : index
      %185 = vector.load %arg2[%c0_81, %c0_82, %c0_83] : memref<1x8x32xf32, #tpu.memory_space<vmem>>, vector<1x8x32xf32>
      %186 = vector.shape_cast %185 : vector<1x8x32xf32> to vector<8x32xf32>
      %187 = arith.truncf %186 : vector<8x32xf32> to vector<8x32xbf16>
      %c0_84 = arith.constant 0 : index
      %c0_85 = arith.constant 0 : index
      %188 = vector.load %arg6[%c0_84, %c0_85] : memref<32x64xbf16, #tpu.memory_space<vmem>>, vector<32x64xbf16>
      %cst_86 = arith.constant dense<0.000000e+00> : vector<8x64xf32>
      %189 = tpu.matmul %187, %188, %cst_86 {dimension_numbers = #tpu.dot_dimension_numbers<[1], [0], [0], [1], [0, 0, 1, 1], [], []>} : vector<8x32xbf16>, vector<32x64xbf16>, vector<8x64xf32> -> vector<8x64xf32>
      %c0_87 = arith.constant 0 : index
      %c0_88 = arith.constant 0 : index
      %190 = vector.load %arg7[%c0_87, %c0_88] : memref<1x64xf32, #tpu.memory_space<vmem>>, vector<1x64xf32>
      %191 = vector.broadcast %190 : vector<1x64xf32> to vector<8x64xf32>
      %192 = arith.addf %189, %191 : vector<8x64xf32>
      %193 = vector.extract_strided_slice %192 {offsets = [0, 0], sizes = [8, 32], strides = [1, 1]} : vector<8x64xf32> to vector<8x32xf32>
      %194 = arith.truncf %193 : vector<8x32xf32> to vector<8x32xbf16>
      %c0_89 = arith.constant 0 : index
      %c0_90 = arith.constant 0 : index
      %195 = vector.load %arg19[%c0_89, %c0_90] : memref<8x32xbf16, #tpu.memory_space<vmem>>, vector<8x32xbf16>
      tpu.vector_store %arg19[%c0_89, %c0_90], %194 {strides = array<i32>} : memref<8x32xbf16, #tpu.memory_space<vmem>>, vector<8x32xbf16>,
      %196 = vector.extract_strided_slice %192 {offsets = [0, 32], sizes = [8, 32], strides = [1, 1]} : vector<8x64xf32> to vector<8x32xf32>
      %197 = arith.truncf %196 : vector<8x32xf32> to vector<8x32xbf16>
      %c0_91 = arith.constant 0 : index
      %c0_92 = arith.constant 0 : index
      %198 = vector.load %arg20[%c0_91, %c0_92] : memref<8x32xbf16, #tpu.memory_space<vmem>>, vector<8x32xbf16>
      tpu.vector_store %arg20[%c0_91, %c0_92], %197 {strides = array<i32>} : memref<8x32xbf16, #tpu.memory_space<vmem>>, vector<8x32xbf16>,
    } else {
    }
    %c0 = arith.constant 0 : index
    %c0_1 = arith.constant 0 : index
    %c0_2 = arith.constant 0 : index
    %3 = vector.load %arg2[%c0, %c0_1, %c0_2] : memref<1x8x32xf32, #tpu.memory_space<vmem>>, vector<1x8x32xf32>
    %4 = vector.shape_cast %3 : vector<1x8x32xf32> to vector<8x32xf32>
    %5 = arith.truncf %4 : vector<8x32xf32> to vector<8x32xbf16>
    %c0_3 = arith.constant 0 : index
    %c0_4 = arith.constant 0 : index
    %6 = vector.load %arg4[%c0_3, %c0_4] : memref<32x32xbf16, #tpu.memory_space<vmem>>, vector<32x32xbf16>
    %cst = arith.constant dense<0.000000e+00> : vector<8x32xf32>
    %7 = tpu.matmul %5, %6, %cst {dimension_numbers = #tpu.dot_dimension_numbers<[1], [0], [0], [1], [0, 0, 1, 1], [], []>} : vector<8x32xbf16>, vector<32x32xbf16>, vector<8x32xf32> -> vector<8x32xf32>
    %c0_5 = arith.constant 0 : index
    %c0_6 = arith.constant 0 : index
    %8 = vector.load %arg5[%c0_5, %c0_6] : memref<1x32xf32, #tpu.memory_space<vmem>>, vector<1x32xf32>
    %9 = vector.broadcast %8 : vector<1x32xf32> to vector<8x32xf32>
    %10 = arith.addf %7, %9 : vector<8x32xf32>
    %c0_7 = arith.constant 0 : index
    %c0_8 = arith.constant 0 : index
    %11 = vector.load %arg19[%c0_7, %c0_8] : memref<8x32xbf16, #tpu.memory_space<vmem>>, vector<8x32xbf16>
    %c0_9 = arith.constant 0 : index
    %c0_10 = arith.constant 0 : index
    %12 = vector.load %arg20[%c0_9, %c0_10] : memref<8x32xbf16, #tpu.memory_space<vmem>>, vector<8x32xbf16>
    %c0_11 = arith.constant 0 : index
    %c0_12 = arith.constant 0 : index
    %13 = vector.load %arg3[%c0_11, %c0_12] : memref<128x8xbf16, #tpu.memory_space<vmem>>, vector<128x8xbf16>
    %cst_13 = arith.constant 0.000000e+00 : f32
    %14 = vector.broadcast %cst_13 : f32 to vector<8x32xf32>
    %c0_14 = arith.constant 0 : index
    %c0_15 = arith.constant 0 : index
    %15 = vector.load %arg9[%c0_14, %c0_15] : memref<1x32xf32, #tpu.memory_space<vmem>>, vector<1x32xf32>
    %16 = vector.broadcast %15 : vector<1x32xf32> to vector<8x32xf32>
    %17 = arith.addf %14, %16 : vector<8x32xf32>
    %18 = vector.extract_strided_slice %10 {offsets = [0, 0], sizes = [8, 8], strides = [1, 1]} : vector<8x32xf32> to vector<8x8xf32>
    %19 = arith.truncf %18 : vector<8x8xf32> to vector<8x8xbf16>
    %20 = vector.extract_strided_slice %11 {offsets = [0, 0], sizes = [8, 8], strides = [1, 1]} : vector<8x32xbf16> to vector<8x8xbf16>
    %21 = vector.extract_strided_slice %12 {offsets = [0, 0], sizes = [8, 8], strides = [1, 1]} : vector<8x32xbf16> to vector<8x8xbf16>
    %cst_16 = arith.constant dense<0.000000e+00> : vector<8x8xf32>
    %22 = tpu.matmul %19, %20, %cst_16 {dimension_numbers = #tpu.dot_dimension_numbers<[1], [1], [0], [0], [0, 0, 1, 0], [], []>} : vector<8x8xbf16>, vector<8x8xbf16>, vector<8x8xf32> -> vector<8x8xf32>
    %cst_17 = arith.constant dense<0.000000e+00> : vector<8x128xf32>
    %23 = tpu.matmul %19, %13, %cst_17 {dimension_numbers = #tpu.dot_dimension_numbers<[1], [1], [0], [0], [0, 0, 1, 0], [], []>} : vector<8x8xbf16>, vector<128x8xbf16>, vector<8x128xf32> -> vector<8x128xf32>
    %c0_i32_18 = arith.constant 0 : i32
    %24 = tpu.dynamic_rotate %23 by %c0_i32_18 dim 1 {stride = 1 : si32, stride_dimension = 0 : si32} : vector<8x128xf32>, i32 -> vector<8x128xf32>
    %25 = vector.extract_strided_slice %24 {offsets = [0, 7], sizes = [8, 8], strides = [1, 1]} : vector<8x128xf32> to vector<8x8xf32>
    %26 = arith.addf %22, %25 : vector<8x8xf32>
    %cst_19 = arith.constant dense<0xFF800000> : vector<8xf32>
    %27 = vector.multi_reduction <maximumf>, %26, %cst_19 [1] : vector<8x8xf32> to vector<8xf32>
    %28 = vector.shape_cast %27 : vector<8xf32> to vector<8x1xf32>
    %29 = vector.broadcast %28 : vector<8x1xf32> to vector<8x8xf32>
    %30 = arith.subf %26, %29 : vector<8x8xf32>
    %31 = math.exp %30 : vector<8x8xf32>
    %cst_20 = arith.constant dense<0.000000e+00> : vector<8xf32>
    %32 = vector.multi_reduction <add>, %31, %cst_20 [1] : vector<8x8xf32> to vector<8xf32>
    %33 = vector.shape_cast %32 : vector<8xf32> to vector<8x1xf32>
    %34 = tpu.reciprocal %33 {approx = true} : vector<8x1xf32> -> vector<8x1xf32>
    %35 = vector.broadcast %34 : vector<8x1xf32> to vector<8x8xf32>
    %36 = arith.mulf %31, %35 : vector<8x8xf32>
    %37 = arith.truncf %36 : vector<8x8xf32> to vector<8x8xbf16>
    %cst_21 = arith.constant dense<0.000000e+00> : vector<8x8xf32>
    %38 = tpu.matmul %37, %21, %cst_21 {dimension_numbers = #tpu.dot_dimension_numbers<[1], [0], [0], [1], [0, 0, 1, 1], [], []>} : vector<8x8xbf16>, vector<8x8xbf16>, vector<8x8xf32> -> vector<8x8xf32>
    %39 = arith.truncf %38 : vector<8x8xf32> to vector<8x8xbf16>
    %c0_22 = arith.constant 0 : index
    %c0_23 = arith.constant 0 : index
    %40 = vector.load %arg8[%c0_22, %c0_23] : memref<32x32xbf16, #tpu.memory_space<vmem>>, vector<8x32xbf16>
    %cst_24 = arith.constant dense<0.000000e+00> : vector<8x32xf32>
    %41 = tpu.matmul %39, %40, %cst_24 {dimension_numbers = #tpu.dot_dimension_numbers<[1], [0], [0], [1], [0, 0, 1, 1], [], []>} : vector<8x8xbf16>, vector<8x32xbf16>, vector<8x32xf32> -> vector<8x32xf32>
    %42 = arith.addf %17, %41 : vector<8x32xf32>
    %43 = vector.extract_strided_slice %10 {offsets = [0, 8], sizes = [8, 8], strides = [1, 1]} : vector<8x32xf32> to vector<8x8xf32>
    %44 = arith.truncf %43 : vector<8x8xf32> to vector<8x8xbf16>
    %45 = vector.extract_strided_slice %11 {offsets = [0, 8], sizes = [8, 8], strides = [1, 1]} : vector<8x32xbf16> to vector<8x8xbf16>
    %46 = vector.extract_strided_slice %12 {offsets = [0, 8], sizes = [8, 8], strides = [1, 1]} : vector<8x32xbf16> to vector<8x8xbf16>
    %cst_25 = arith.constant dense<0.000000e+00> : vector<8x8xf32>
    %47 = tpu.matmul %44, %45, %cst_25 {dimension_numbers = #tpu.dot_dimension_numbers<[1], [1], [0], [0], [0, 0, 1, 0], [], []>} : vector<8x8xbf16>, vector<8x8xbf16>, vector<8x8xf32> -> vector<8x8xf32>
    %cst_26 = arith.constant dense<0.000000e+00> : vector<8x128xf32>
    %48 = tpu.matmul %44, %13, %cst_26 {dimension_numbers = #tpu.dot_dimension_numbers<[1], [1], [0], [0], [0, 0, 1, 0], [], []>} : vector<8x8xbf16>, vector<128x8xbf16>, vector<8x128xf32> -> vector<8x128xf32>
    %c0_i32_27 = arith.constant 0 : i32
    %49 = tpu.dynamic_rotate %48 by %c0_i32_27 dim 1 {stride = 1 : si32, stride_dimension = 0 : si32} : vector<8x128xf32>, i32 -> vector<8x128xf32>
    %50 = vector.extract_strided_slice %49 {offsets = [0, 7], sizes = [8, 8], strides = [1, 1]} : vector<8x128xf32> to vector<8x8xf32>
    %51 = arith.addf %47, %50 : vector<8x8xf32>
    %cst_28 = arith.constant dense<0xFF800000> : vector<8xf32>
    %52 = vector.multi_reduction <maximumf>, %51, %cst_28 [1] : vector<8x8xf32> to vector<8xf32>
    %53 = vector.shape_cast %52 : vector<8xf32> to vector<8x1xf32>
    %54 = vector.broadcast %53 : vector<8x1xf32> to vector<8x8xf32>
    %55 = arith.subf %51, %54 : vector<8x8xf32>
    %56 = math.exp %55 : vector<8x8xf32>
    %cst_29 = arith.constant dense<0.000000e+00> : vector<8xf32>
    %57 = vector.multi_reduction <add>, %56, %cst_29 [1] : vector<8x8xf32> to vector<8xf32>
    %58 = vector.shape_cast %57 : vector<8xf32> to vector<8x1xf32>
    %59 = tpu.reciprocal %58 {approx = true} : vector<8x1xf32> -> vector<8x1xf32>
    %60 = vector.broadcast %59 : vector<8x1xf32> to vector<8x8xf32>
    %61 = arith.mulf %56, %60 : vector<8x8xf32>
    %62 = arith.truncf %61 : vector<8x8xf32> to vector<8x8xbf16>
    %cst_30 = arith.constant dense<0.000000e+00> : vector<8x8xf32>
    %63 = tpu.matmul %62, %46, %cst_30 {dimension_numbers = #tpu.dot_dimension_numbers<[1], [0], [0], [1], [0, 0, 1, 1], [], []>} : vector<8x8xbf16>, vector<8x8xbf16>, vector<8x8xf32> -> vector<8x8xf32>
    %64 = arith.truncf %63 : vector<8x8xf32> to vector<8x8xbf16>
    %c8 = arith.constant 8 : index
    %c0_31 = arith.constant 0 : index
    %65 = vector.load %arg8[%c8, %c0_31] : memref<32x32xbf16, #tpu.memory_space<vmem>>, vector<8x32xbf16>
    %cst_32 = arith.constant dense<0.000000e+00> : vector<8x32xf32>
    %66 = tpu.matmul %64, %65, %cst_32 {dimension_numbers = #tpu.dot_dimension_numbers<[1], [0], [0], [1], [0, 0, 1, 1], [], []>} : vector<8x8xbf16>, vector<8x32xbf16>, vector<8x32xf32> -> vector<8x32xf32>
    %67 = arith.addf %42, %66 : vector<8x32xf32>
    %68 = vector.extract_strided_slice %10 {offsets = [0, 16], sizes = [8, 8], strides = [1, 1]} : vector<8x32xf32> to vector<8x8xf32>
    %69 = arith.truncf %68 : vector<8x8xf32> to vector<8x8xbf16>
    %70 = vector.extract_strided_slice %11 {offsets = [0, 16], sizes = [8, 8], strides = [1, 1]} : vector<8x32xbf16> to vector<8x8xbf16>
    %71 = vector.extract_strided_slice %12 {offsets = [0, 16], sizes = [8, 8], strides = [1, 1]} : vector<8x32xbf16> to vector<8x8xbf16>
    %cst_33 = arith.constant dense<0.000000e+00> : vector<8x8xf32>
    %72 = tpu.matmul %69, %70, %cst_33 {dimension_numbers = #tpu.dot_dimension_numbers<[1], [1], [0], [0], [0, 0, 1, 0], [], []>} : vector<8x8xbf16>, vector<8x8xbf16>, vector<8x8xf32> -> vector<8x8xf32>
    %cst_34 = arith.constant dense<0.000000e+00> : vector<8x128xf32>
    %73 = tpu.matmul %69, %13, %cst_34 {dimension_numbers = #tpu.dot_dimension_numbers<[1], [1], [0], [0], [0, 0, 1, 0], [], []>} : vector<8x8xbf16>, vector<128x8xbf16>, vector<8x128xf32> -> vector<8x128xf32>
    %c0_i32_35 = arith.constant 0 : i32
    %74 = tpu.dynamic_rotate %73 by %c0_i32_35 dim 1 {stride = 1 : si32, stride_dimension = 0 : si32} : vector<8x128xf32>, i32 -> vector<8x128xf32>
    %75 = vector.extract_strided_slice %74 {offsets = [0, 7], sizes = [8, 8], strides = [1, 1]} : vector<8x128xf32> to vector<8x8xf32>
    %76 = arith.addf %72, %75 : vector<8x8xf32>
    %cst_36 = arith.constant dense<0xFF800000> : vector<8xf32>
    %77 = vector.multi_reduction <maximumf>, %76, %cst_36 [1] : vector<8x8xf32> to vector<8xf32>
    %78 = vector.shape_cast %77 : vector<8xf32> to vector<8x1xf32>
    %79 = vector.broadcast %78 : vector<8x1xf32> to vector<8x8xf32>
    %80 = arith.subf %76, %79 : vector<8x8xf32>
    %81 = math.exp %80 : vector<8x8xf32>
    %cst_37 = arith.constant dense<0.000000e+00> : vector<8xf32>
    %82 = vector.multi_reduction <add>, %81, %cst_37 [1] : vector<8x8xf32> to vector<8xf32>
    %83 = vector.shape_cast %82 : vector<8xf32> to vector<8x1xf32>
    %84 = tpu.reciprocal %83 {approx = true} : vector<8x1xf32> -> vector<8x1xf32>
    %85 = vector.broadcast %84 : vector<8x1xf32> to vector<8x8xf32>
    %86 = arith.mulf %81, %85 : vector<8x8xf32>
    %87 = arith.truncf %86 : vector<8x8xf32> to vector<8x8xbf16>
    %cst_38 = arith.constant dense<0.000000e+00> : vector<8x8xf32>
    %88 = tpu.matmul %87, %71, %cst_38 {dimension_numbers = #tpu.dot_dimension_numbers<[1], [0], [0], [1], [0, 0, 1, 1], [], []>} : vector<8x8xbf16>, vector<8x8xbf16>, vector<8x8xf32> -> vector<8x8xf32>
    %89 = arith.truncf %88 : vector<8x8xf32> to vector<8x8xbf16>
    %c16 = arith.constant 16 : index
    %c0_39 = arith.constant 0 : index
    %90 = vector.load %arg8[%c16, %c0_39] : memref<32x32xbf16, #tpu.memory_space<vmem>>, vector<8x32xbf16>
    %cst_40 = arith.constant dense<0.000000e+00> : vector<8x32xf32>
    %91 = tpu.matmul %89, %90, %cst_40 {dimension_numbers = #tpu.dot_dimension_numbers<[1], [0], [0], [1], [0, 0, 1, 1], [], []>} : vector<8x8xbf16>, vector<8x32xbf16>, vector<8x32xf32> -> vector<8x32xf32>
    %92 = arith.addf %67, %91 : vector<8x32xf32>
    %93 = vector.extract_strided_slice %10 {offsets = [0, 24], sizes = [8, 8], strides = [1, 1]} : vector<8x32xf32> to vector<8x8xf32>
    %94 = arith.truncf %93 : vector<8x8xf32> to vector<8x8xbf16>
    %95 = vector.extract_strided_slice %11 {offsets = [0, 24], sizes = [8, 8], strides = [1, 1]} : vector<8x32xbf16> to vector<8x8xbf16>
    %96 = vector.extract_strided_slice %12 {offsets = [0, 24], sizes = [8, 8], strides = [1, 1]} : vector<8x32xbf16> to vector<8x8xbf16>
    %cst_41 = arith.constant dense<0.000000e+00> : vector<8x8xf32>
    %97 = tpu.matmul %94, %95, %cst_41 {dimension_numbers = #tpu.dot_dimension_numbers<[1], [1], [0], [0], [0, 0, 1, 0], [], []>} : vector<8x8xbf16>, vector<8x8xbf16>, vector<8x8xf32> -> vector<8x8xf32>
    %cst_42 = arith.constant dense<0.000000e+00> : vector<8x128xf32>
    %98 = tpu.matmul %94, %13, %cst_42 {dimension_numbers = #tpu.dot_dimension_numbers<[1], [1], [0], [0], [0, 0, 1, 0], [], []>} : vector<8x8xbf16>, vector<128x8xbf16>, vector<8x128xf32> -> vector<8x128xf32>
    %c0_i32_43 = arith.constant 0 : i32
    %99 = tpu.dynamic_rotate %98 by %c0_i32_43 dim 1 {stride = 1 : si32, stride_dimension = 0 : si32} : vector<8x128xf32>, i32 -> vector<8x128xf32>
    %100 = vector.extract_strided_slice %99 {offsets = [0, 7], sizes = [8, 8], strides = [1, 1]} : vector<8x128xf32> to vector<8x8xf32>
    %101 = arith.addf %97, %100 : vector<8x8xf32>
    %cst_44 = arith.constant dense<0xFF800000> : vector<8xf32>
    %102 = vector.multi_reduction <maximumf>, %101, %cst_44 [1] : vector<8x8xf32> to vector<8xf32>
    %103 = vector.shape_cast %102 : vector<8xf32> to vector<8x1xf32>
    %104 = vector.broadcast %103 : vector<8x1xf32> to vector<8x8xf32>
    %105 = arith.subf %101, %104 : vector<8x8xf32>
    %106 = math.exp %105 : vector<8x8xf32>
    %cst_45 = arith.constant dense<0.000000e+00> : vector<8xf32>
    %107 = vector.multi_reduction <add>, %106, %cst_45 [1] : vector<8x8xf32> to vector<8xf32>
    %108 = vector.shape_cast %107 : vector<8xf32> to vector<8x1xf32>
    %109 = tpu.reciprocal %108 {approx = true} : vector<8x1xf32> -> vector<8x1xf32>
    %110 = vector.broadcast %109 : vector<8x1xf32> to vector<8x8xf32>
    %111 = arith.mulf %106, %110 : vector<8x8xf32>
    %112 = arith.truncf %111 : vector<8x8xf32> to vector<8x8xbf16>
    %cst_46 = arith.constant dense<0.000000e+00> : vector<8x8xf32>
    %113 = tpu.matmul %112, %96, %cst_46 {dimension_numbers = #tpu.dot_dimension_numbers<[1], [0], [0], [1], [0, 0, 1, 1], [], []>} : vector<8x8xbf16>, vector<8x8xbf16>, vector<8x8xf32> -> vector<8x8xf32>
    %114 = arith.truncf %113 : vector<8x8xf32> to vector<8x8xbf16>
    %c24 = arith.constant 24 : index
    %c0_47 = arith.constant 0 : index
    %115 = vector.load %arg8[%c24, %c0_47] : memref<32x32xbf16, #tpu.memory_space<vmem>>, vector<8x32xbf16>
    %cst_48 = arith.constant dense<0.000000e+00> : vector<8x32xf32>
    %116 = tpu.matmul %114, %115, %cst_48 {dimension_numbers = #tpu.dot_dimension_numbers<[1], [0], [0], [1], [0, 0, 1, 1], [], []>} : vector<8x8xbf16>, vector<8x32xbf16>, vector<8x32xf32> -> vector<8x32xf32>
    %117 = arith.addf %92, %116 : vector<8x32xf32>
    %118 = arith.addf %4, %117 : vector<8x32xf32>
    %c0_49 = arith.constant 0 : index
    %c0_50 = arith.constant 0 : index
    %119 = vector.load %arg10[%c0_49, %c0_50] : memref<1x32xf32, #tpu.memory_space<vmem>>, vector<1x32xf32>
    %c0_51 = arith.constant 0 : index
    %c0_52 = arith.constant 0 : index
    %120 = vector.load %arg11[%c0_51, %c0_52] : memref<1x32xf32, #tpu.memory_space<vmem>>, vector<1x32xf32>
    %cst_53 = arith.constant dense<0.000000e+00> : vector<8xf32>
    %121 = vector.multi_reduction <add>, %118, %cst_53 [1] : vector<8x32xf32> to vector<8xf32>
    %122 = vector.shape_cast %121 : vector<8xf32> to vector<8x1xf32>
    %cst_54 = arith.constant 3.200000e+01 : f32
    %123 = vector.broadcast %cst_54 : f32 to vector<8x1xf32>
    %124 = arith.divf %122, %123 : vector<8x1xf32>
    %125 = vector.broadcast %124 : vector<8x1xf32> to vector<8x32xf32>
    %126 = arith.subf %118, %125 : vector<8x32xf32>
    %127 = arith.mulf %126, %126 : vector<8x32xf32>
    %cst_55 = arith.constant dense<0.000000e+00> : vector<8xf32>
    %128 = vector.multi_reduction <add>, %127, %cst_55 [1] : vector<8x32xf32> to vector<8xf32>
    %129 = vector.shape_cast %128 : vector<8xf32> to vector<8x1xf32>
    %cst_56 = arith.constant 3.200000e+01 : f32
    %130 = vector.broadcast %cst_56 : f32 to vector<8x1xf32>
    %131 = arith.divf %129, %130 : vector<8x1xf32>
    %132 = vector.broadcast %124 : vector<8x1xf32> to vector<8x32xf32>
    %133 = arith.subf %118, %132 : vector<8x32xf32>
    %cst_57 = arith.constant 9.99999997E-7 : f32
    %134 = vector.broadcast %cst_57 : f32 to vector<8x1xf32>
    %135 = arith.addf %131, %134 : vector<8x1xf32>
    %136 = math.rsqrt %135 : vector<8x1xf32>
    %137 = vector.broadcast %136 : vector<8x1xf32> to vector<8x32xf32>
    %138 = arith.mulf %133, %137 : vector<8x32xf32>
    %139 = vector.broadcast %119 : vector<1x32xf32> to vector<8x32xf32>
    %140 = arith.mulf %138, %139 : vector<8x32xf32>
    %141 = vector.broadcast %120 : vector<1x32xf32> to vector<8x32xf32>
    %142 = arith.addf %140, %141 : vector<8x32xf32>
    %143 = arith.truncf %142 : vector<8x32xf32> to vector<8x32xbf16>
    %c0_58 = arith.constant 0 : index
    %c0_59 = arith.constant 0 : index
    %144 = vector.load %arg12[%c0_58, %c0_59] : memref<32x64xbf16, #tpu.memory_space<vmem>>, vector<32x64xbf16>
    %cst_60 = arith.constant dense<0.000000e+00> : vector<8x64xf32>
    %145 = tpu.matmul %143, %144, %cst_60 {dimension_numbers = #tpu.dot_dimension_numbers<[1], [0], [0], [1], [0, 0, 1, 1], [], []>} : vector<8x32xbf16>, vector<32x64xbf16>, vector<8x64xf32> -> vector<8x64xf32>
    %c0_61 = arith.constant 0 : index
    %c0_62 = arith.constant 0 : index
    %146 = vector.load %arg13[%c0_61, %c0_62] : memref<1x64xf32, #tpu.memory_space<vmem>>, vector<1x64xf32>
    %147 = vector.broadcast %146 : vector<1x64xf32> to vector<8x64xf32>
    %148 = arith.addf %145, %147 : vector<8x64xf32>
    %cst_63 = arith.constant 0.000000e+00 : f32
    %149 = vector.broadcast %cst_63 : f32 to vector<8x64xf32>
    %150 = arith.maximumf %148, %149 : vector<8x64xf32>
    %151 = arith.truncf %150 : vector<8x64xf32> to vector<8x64xbf16>
    %c0_64 = arith.constant 0 : index
    %c0_65 = arith.constant 0 : index
    %152 = vector.load %arg14[%c0_64, %c0_65] : memref<64x32xbf16, #tpu.memory_space<vmem>>, vector<64x32xbf16>
    %cst_66 = arith.constant dense<0.000000e+00> : vector<8x32xf32>
    %153 = tpu.matmul %151, %152, %cst_66 {dimension_numbers = #tpu.dot_dimension_numbers<[1], [0], [0], [1], [0, 0, 1, 1], [], []>} : vector<8x64xbf16>, vector<64x32xbf16>, vector<8x32xf32> -> vector<8x32xf32>
    %c0_67 = arith.constant 0 : index
    %c0_68 = arith.constant 0 : index
    %154 = vector.load %arg15[%c0_67, %c0_68] : memref<1x32xf32, #tpu.memory_space<vmem>>, vector<1x32xf32>
    %155 = vector.broadcast %154 : vector<1x32xf32> to vector<8x32xf32>
    %156 = arith.addf %153, %155 : vector<8x32xf32>
    %157 = arith.addf %142, %156 : vector<8x32xf32>
    %c0_69 = arith.constant 0 : index
    %c0_70 = arith.constant 0 : index
    %158 = vector.load %arg16[%c0_69, %c0_70] : memref<1x32xf32, #tpu.memory_space<vmem>>, vector<1x32xf32>
    %c0_71 = arith.constant 0 : index
    %c0_72 = arith.constant 0 : index
    %159 = vector.load %arg17[%c0_71, %c0_72] : memref<1x32xf32, #tpu.memory_space<vmem>>, vector<1x32xf32>
    %cst_73 = arith.constant dense<0.000000e+00> : vector<8xf32>
    %160 = vector.multi_reduction <add>, %157, %cst_73 [1] : vector<8x32xf32> to vector<8xf32>
    %161 = vector.shape_cast %160 : vector<8xf32> to vector<8x1xf32>
    %cst_74 = arith.constant 3.200000e+01 : f32
    %162 = vector.broadcast %cst_74 : f32 to vector<8x1xf32>
    %163 = arith.divf %161, %162 : vector<8x1xf32>
    %164 = vector.broadcast %163 : vector<8x1xf32> to vector<8x32xf32>
    %165 = arith.subf %157, %164 : vector<8x32xf32>
    %166 = arith.mulf %165, %165 : vector<8x32xf32>
    %cst_75 = arith.constant dense<0.000000e+00> : vector<8xf32>
    %167 = vector.multi_reduction <add>, %166, %cst_75 [1] : vector<8x32xf32> to vector<8xf32>
    %168 = vector.shape_cast %167 : vector<8xf32> to vector<8x1xf32>
    %cst_76 = arith.constant 3.200000e+01 : f32
    %169 = vector.broadcast %cst_76 : f32 to vector<8x1xf32>
    %170 = arith.divf %168, %169 : vector<8x1xf32>
    %171 = vector.broadcast %163 : vector<8x1xf32> to vector<8x32xf32>
    %172 = arith.subf %157, %171 : vector<8x32xf32>
    %cst_77 = arith.constant 9.99999997E-7 : f32
    %173 = vector.broadcast %cst_77 : f32 to vector<8x1xf32>
    %174 = arith.addf %170, %173 : vector<8x1xf32>
    %175 = math.rsqrt %174 : vector<8x1xf32>
    %176 = vector.broadcast %175 : vector<8x1xf32> to vector<8x32xf32>
    %177 = arith.mulf %172, %176 : vector<8x32xf32>
    %178 = vector.broadcast %158 : vector<1x32xf32> to vector<8x32xf32>
    %179 = arith.mulf %177, %178 : vector<8x32xf32>
    %180 = vector.broadcast %159 : vector<1x32xf32> to vector<8x32xf32>
    %181 = arith.addf %179, %180 : vector<8x32xf32>
    %c0_78 = arith.constant 0 : index
    %c0_79 = arith.constant 0 : index
    %c0_80 = arith.constant 0 : index
    %182 = vector.load %arg18[%c0_78, %c0_79, %c0_80] : memref<1x8x32xf32, #tpu.memory_space<vmem>>, vector<1x8x32xf32>
    %183 = vector.shape_cast %182 : vector<1x8x32xf32> to vector<8x32xf32>
    %184 = vector.shape_cast %181 : vector<8x32xf32> to vector<1x8x32xf32>
    tpu.vector_store %arg18[%c0_78, %c0_79, %c0_80], %184 {strides = array<i32>} : memref<1x8x32xf32, #tpu.memory_space<vmem>>, vector<1x8x32xf32>,
    return
  }
  func.func @transform_0(%arg0: i32, %arg1: i32) -> (i32, i32, i32) {
    %c0_i32 = arith.constant 0 : i32
    %c0_i32_0 = arith.constant 0 : i32
    %c0_i32_1 = arith.constant 0 : i32
    return %arg0, %c0_i32, %c0_i32_0 : i32, i32, i32
  }
  func.func @transform_1(%arg0: i32, %arg1: i32) -> (i32, i32) {
    %c0_i32 = arith.constant 0 : i32
    %c0_i32_0 = arith.constant 0 : i32
    %c0_i32_1 = arith.constant 0 : i32
    return %c0_i32, %c0_i32_0 : i32, i32
  }
  func.func @transform_2(%arg0: i32, %arg1: i32) -> (i32, i32) {
    %c0_i32 = arith.constant 0 : i32
    %c0_i32_0 = arith.constant 0 : i32
    %c0_i32_1 = arith.constant 0 : i32
    return %c0_i32, %c0_i32_0 : i32, i32
  }
  func.func @transform_3(%arg0: i32, %arg1: i32) -> (i32, i32) {
    %c0_i32 = arith.constant 0 : i32
    %c0_i32_0 = arith.constant 0 : i32
    %c0_i32_1 = arith.constant 0 : i32
    return %c0_i32, %c0_i32_0 : i32, i32
  }
  func.func @transform_4(%arg0: i32, %arg1: i32) -> (i32, i32) {
    %c0_i32 = arith.constant 0 : i32
    %c0_i32_0 = arith.constant 0 : i32
    %c0_i32_1 = arith.constant 0 : i32
    return %c0_i32, %c0_i32_0 : i32, i32
  }
  func.func @transform_5(%arg0: i32, %arg1: i32) -> (i32, i32) {
    %c0_i32 = arith.constant 0 : i32
    %c0_i32_0 = arith.constant 0 : i32
    %c0_i32_1 = arith.constant 0 : i32
    return %c0_i32, %c0_i32_0 : i32, i32
  }
  func.func @transform_6(%arg0: i32, %arg1: i32) -> (i32, i32) {
    %c0_i32 = arith.constant 0 : i32
    %c0_i32_0 = arith.constant 0 : i32
    %c0_i32_1 = arith.constant 0 : i32
    return %c0_i32, %c0_i32_0 : i32, i32
  }
  func.func @transform_7(%arg0: i32, %arg1: i32) -> (i32, i32) {
    %c0_i32 = arith.constant 0 : i32
    %c0_i32_0 = arith.constant 0 : i32
    %c0_i32_1 = arith.constant 0 : i32
    return %c0_i32, %c0_i32_0 : i32, i32
  }
  func.func @transform_8(%arg0: i32, %arg1: i32) -> (i32, i32) {
    %c0_i32 = arith.constant 0 : i32
    %c0_i32_0 = arith.constant 0 : i32
    %c0_i32_1 = arith.constant 0 : i32
    return %c0_i32, %c0_i32_0 : i32, i32
  }
  func.func @transform_9(%arg0: i32, %arg1: i32) -> (i32, i32) {
    %c0_i32 = arith.constant 0 : i32
    %c0_i32_0 = arith.constant 0 : i32
    %c0_i32_1 = arith.constant 0 : i32
    return %c0_i32, %c0_i32_0 : i32, i32
  }
  func.func @transform_10(%arg0: i32, %arg1: i32) -> (i32, i32) {
    %c0_i32 = arith.constant 0 : i32
    %c0_i32_0 = arith.constant 0 : i32
    %c0_i32_1 = arith.constant 0 : i32
    return %c0_i32, %c0_i32_0 : i32, i32
  }
  func.func @transform_11(%arg0: i32, %arg1: i32) -> (i32, i32) {
    %c0_i32 = arith.constant 0 : i32
    %c0_i32_0 = arith.constant 0 : i32
    %c0_i32_1 = arith.constant 0 : i32
    return %c0_i32, %c0_i32_0 : i32, i32
  }
  func.func @transform_12(%arg0: i32, %arg1: i32) -> (i32, i32) {
    %c0_i32 = arith.constant 0 : i32
    %c0_i32_0 = arith.constant 0 : i32
    %c0_i32_1 = arith.constant 0 : i32
    return %c0_i32, %c0_i32_0 : i32, i32
  }
  func.func @transform_13(%arg0: i32, %arg1: i32) -> (i32, i32) {
    %c0_i32 = arith.constant 0 : i32
    %c0_i32_0 = arith.constant 0 : i32
    %c0_i32_1 = arith.constant 0 : i32
    return %c0_i32, %c0_i32_0 : i32, i32
  }
  func.func @transform_14(%arg0: i32, %arg1: i32) -> (i32, i32) {
    %c0_i32 = arith.constant 0 : i32
    %c0_i32_0 = arith.constant 0 : i32
    %c0_i32_1 = arith.constant 0 : i32
    return %c0_i32, %c0_i32_0 : i32, i32
  }
  func.func @transform_15(%arg0: i32, %arg1: i32) -> (i32, i32) {
    %c0_i32 = arith.constant 0 : i32
    %c0_i32_0 = arith.constant 0 : i32
    %c0_i32_1 = arith.constant 0 : i32
    return %c0_i32, %c0_i32_0 : i32, i32
  }
  func.func @transform_16(%arg0: i32, %arg1: i32) -> (i32, i32, i32) {
    %c0_i32 = arith.constant 0 : i32
    %c0_i32_0 = arith.constant 0 : i32
    return %arg0, %arg1, %c0_i32 : i32, i32, i32
  }
}

</mosaic_0001>

<llo_original>
// kernel: tpu_custom_call.1
$region0: #{tpu_custom_call.1}
  #allocation0 [shape = 'u32[]', space=smem, size = 0x4, offset = 0x4, fixed_abs, tag = 'smem constant byte address 0x4 - core index']
  #allocation1 [shape = 'u32[144,128]{1,0:T(1,128)}', space=vmem, size = 0x12000, scoped, tag = 'internal scratch']
  #allocation2 [shape = 'bf16[8,32]{1,0:T(8,128)(2,1)}', space=vmem, size = 0x800, scoped, tag = 'scratch operand']
  #allocation3 [shape = 'bf16[8,32]{1,0:T(8,128)(2,1)}', space=vmem, size = 0x800, scoped, tag = 'scratch operand']
  %s0 = inlined_call_operand.vmem [shape: f32[2,8,32], index: 0, kind: input, shape index: {}]
  %s1 = inlined_call_operand.vmem [shape: bf16[128,8], index: 1, kind: input, shape index: {}]
  %s2 = inlined_call_operand.vmem [shape: bf16[32,32], index: 2, kind: input, shape index: {}]
  %s3 = inlined_call_operand.vmem [shape: f32[1,32], index: 3, kind: input, shape index: {}]
  %s4 = inlined_call_operand.vmem [shape: bf16[32,64], index: 4, kind: input, shape index: {}]
  %s5 = inlined_call_operand.vmem [shape: f32[1,64], index: 5, kind: input, shape index: {}]
  %s6 = inlined_call_operand.vmem [shape: bf16[32,32], index: 6, kind: input, shape index: {}]
  %s7 = inlined_call_operand.vmem [shape: f32[1,32], index: 7, kind: input, shape index: {}]
  %s8 = inlined_call_operand.vmem [shape: f32[1,32], index: 8, kind: input, shape index: {}]
  %s9 = inlined_call_operand.vmem [shape: f32[1,32], index: 9, kind: input, shape index: {}]
  %s10 = inlined_call_operand.vmem [shape: bf16[32,64], index: 10, kind: input, shape index: {}]
  %s11 = inlined_call_operand.vmem [shape: f32[1,64], index: 11, kind: input, shape index: {}]
  %s12 = inlined_call_operand.vmem [shape: bf16[64,32], index: 12, kind: input, shape index: {}]
  %s13 = inlined_call_operand.vmem [shape: f32[1,32], index: 13, kind: input, shape index: {}]
  %s14 = inlined_call_operand.vmem [shape: f32[1,32], index: 14, kind: input, shape index: {}]
  %s15 = inlined_call_operand.vmem [shape: f32[1,32], index: 15, kind: input, shape index: {}]
  %s16 = inlined_call_operand.hbm [shape: f32[2,8,32], index: 16, kind: output, shape index: {}]
  %s17 = sld [smem:[#allocation0]]
  $region101: #{tpu_custom_call.1} parent=0
    _
  %s19 = ssub.s32 1, %s17
  %s20 = scalar_select 0, %s19, %s17
  $region1: #{tpu_custom_call.1} parent=0
    #allocation4 [shape = 'u8[8192]{0}', space=vmem, size = 0x2000, scoped, tag = 'output window, operand 0']
    #allocation5 [shape = 's32[2]{0}', space=sflag, size = 0x8, scoped, tag = 'scoped memory for tpu_custom_call.1']
    %21 = vsyncpa [#allocation5], 0
    %s22 = scalar_lea.sflag [#allocation5], 1
    %23 = vsyncpa %s22, 0
    loop: start=0, step=1, limit=4
    $region2: #{tpu_custom_call.1} parent=1 // loop_pre_header
      _
    $region3: #{tpu_custom_call.1} parent=1 // loop_header
      %s25 = sphi 0, %s29
      %p26 = scmp.ge.s32.totalorder %s25, 4
      %s32 = sphi 0, %s44
      %s33 = sphi 0, %s40
      %s34 = sphi 0, %s32
      %s35 = sphi 0, %s33
      %s36 = sphi 0, %s34
      %s37 = sphi 0, %s35
      %s47 = sphi 0, %s49
      %s50 = sphi 0, %s47
      %s51 = sphi 0, %s50
      %s67 = sphi 0, %s51
      %s71 = sphi 0, %s71
      %s73 = sphi 0, %s71
      %s74 = sphi 0, %s73
      %s88 = sphi 0, %s74
      %s92 = sphi 0, %s92
      %s94 = sphi 0, %s92
      %s95 = sphi 0, %s94
      %s109 = sphi 0, %s95
      %s113 = sphi 0, %s113
      %s115 = sphi 0, %s113
      %s116 = sphi 0, %s115
      %s130 = sphi 0, %s116
      %s134 = sphi 0, %s134
      %s136 = sphi 0, %s134
      %s137 = sphi 0, %s136
      %s151 = sphi 0, %s137
      %s155 = sphi 0, %s155
      %s157 = sphi 0, %s155
      %s158 = sphi 0, %s157
      %s172 = sphi 0, %s158
      %s176 = sphi 0, %s176
      %s178 = sphi 0, %s176
      %s179 = sphi 0, %s178
      %s193 = sphi 0, %s179
      %s197 = sphi 0, %s197
      %s199 = sphi 0, %s197
      %s200 = sphi 0, %s199
      %s214 = sphi 0, %s200
      %s218 = sphi 0, %s218
      %s220 = sphi 0, %s218
      %s221 = sphi 0, %s220
      %s235 = sphi 0, %s221
      %s239 = sphi 0, %s239
      %s241 = sphi 0, %s239
      %s242 = sphi 0, %s241
      %s256 = sphi 0, %s242
      %s260 = sphi 0, %s260
      %s262 = sphi 0, %s260
      %s263 = sphi 0, %s262
      %s277 = sphi 0, %s263
      %s281 = sphi 0, %s281
      %s283 = sphi 0, %s281
      %s284 = sphi 0, %s283
      %s298 = sphi 0, %s284
      %s302 = sphi 0, %s302
      %s304 = sphi 0, %s302
      %s305 = sphi 0, %s304
      %s319 = sphi 0, %s305
      %s323 = sphi 0, %s323
      %s325 = sphi 0, %s323
      %s326 = sphi 0, %s325
      %s340 = sphi 0, %s326
      %s344 = sphi 0, %s344
      %s346 = sphi 0, %s344
      %s347 = sphi 0, %s346
      %s361 = sphi 0, %s347
      %s365 = sphi 0, %s365
      %s367 = sphi 0, %s365
      %s368 = sphi 0, %s367
      %s382 = sphi 0, %s368
      %s390 = sphi 0, %s392
      %s393 = sphi 0, %s390
      %s394 = sphi 0, %s393
      %s410 = sphi 0, %s394
    $region4: #{tpu_custom_call.1} parent=1 // loop_header_branch
      %28 = sbr.rel (%p26) target = $region8
    $region5: #{tpu_custom_call.1} parent=1 // loop_body
      %s30 = ssub.s32 %s25, 1
      %s31 = ssub.s32 %s25, 2
      %s38 = sadd.s32 1, %s33
      %p39 = scmp.ge.s32.totalorder %s38, 1
      %s40 = scalar_select %p39, 0, %s38
      %s41 = sadd.s32 1, %s32
      %s42 = scalar_select %p39, %s41, %s32
      %p43 = scmp.ge.s32.totalorder %s42, 2
      %s44 = scalar_select %p43, 0, %s42
      %s45 = ssub.s32 %s32, %s44
      %p46 = scmp.eq.s32.totalorder %s45, 0
      %s48 = sadd.s32 %s47, 1
      %s49 = scalar_select %p46, %s47, %s48
      %p52 = pneg %p46
      %p53 = scmp.eq.s32.totalorder %s25, 1
      %p54 = por %p52, %p53
      %p55 = scmp.ne.s32.totalorder %s47, %s50
      %p56 = scmp.eq.s32.totalorder %s25, 0
      %p57 = por %p55, %p56
      %p58 = scmp.ne.s32.totalorder %s47, %s50
      %p59 = scmp.eq.s32.totalorder %s30, 1
      %p60 = por %p58, %p59
      %p61 = scmp.ne.s32.totalorder %s50, %s51
      %p62 = scmp.eq.s32.totalorder %s30, 0
      %p63 = por %p61, %p62
      %p64 = scmp.ne.s32.totalorder %s50, %s51
      %p65 = scmp.eq.s32.totalorder %s31, 1
      %p66 = por %p64, %p65
      %p68 = scmp.ne.s32.totalorder %s51, %s67
      %p69 = scmp.eq.s32.totalorder %s31, 0
      %p70 = por %p68, %p69
      %s72 = sadd.s32 %s71, 1
      %p75 = scmp.eq.s32.totalorder %s25, 1
      %p76 = scmp.ne.s32.totalorder %s71, %s73
      %p77 = scmp.eq.s32.totalorder %s25, 0
      %p78 = por %p76, %p77
      %p79 = scmp.ne.s32.totalorder %s71, %s73
      %p80 = scmp.eq.s32.totalorder %s30, 1
      %p81 = por %p79, %p80
      %p82 = scmp.ne.s32.totalorder %s73, %s74
      %p83 = scmp.eq.s32.totalorder %s30, 0
      %p84 = por %p82, %p83
      %p85 = scmp.ne.s32.totalorder %s73, %s74
      %p86 = scmp.eq.s32.totalorder %s31, 1
      %p87 = por %p85, %p86
      %p89 = scmp.ne.s32.totalorder %s74, %s88
      %p90 = scmp.eq.s32.totalorder %s31, 0
      %p91 = por %p89, %p90
      %s93 = sadd.s32 %s92, 1
      %p96 = scmp.eq.s32.totalorder %s25, 1
      %p97 = scmp.ne.s32.totalorder %s92, %s94
      %p98 = scmp.eq.s32.totalorder %s25, 0
      %p99 = por %p97, %p98
      %p100 = scmp.ne.s32.totalorder %s92, %s94
      %p101 = scmp.eq.s32.totalorder %s30, 1
      %p102 = por %p100, %p101
      %p103 = scmp.ne.s32.totalorder %s94, %s95
      %p104 = scmp.eq.s32.totalorder %s30, 0
      %p105 = por %p103, %p104
      %p106 = scmp.ne.s32.totalorder %s94, %s95
      %p107 = scmp.eq.s32.totalorder %s31, 1
      %p108 = por %p106, %p107
      %p110 = scmp.ne.s32.totalorder %s95, %s109
      %p111 = scmp.eq.s32.totalorder %s31, 0
      %p112 = por %p110, %p111
      %s114 = sadd.s32 %s113, 1
      %p117 = scmp.eq.s32.totalorder %s25, 1
      %p118 = scmp.ne.s32.totalorder %s113, %s115
      %p119 = scmp.eq.s32.totalorder %s25, 0
      %p120 = por %p118, %p119
      %p121 = scmp.ne.s32.totalorder %s113, %s115
      %p122 = scmp.eq.s32.totalorder %s30, 1
      %p123 = por %p121, %p122
      %p124 = scmp.ne.s32.totalorder %s115, %s116
      %p125 = scmp.eq.s32.totalorder %s30, 0
      %p126 = por %p124, %p125
      %p127 = scmp.ne.s32.totalorder %s115, %s116
      %p128 = scmp.eq.s32.totalorder %s31, 1
      %p129 = por %p127, %p128
      %p131 = scmp.ne.s32.totalorder %s116, %s130
      %p132 = scmp.eq.s32.totalorder %s31, 0
      %p133 = por %p131, %p132
      %s135 = sadd.s32 %s134, 1
      %p138 = scmp.eq.s32.totalorder %s25, 1
      %p139 = scmp.ne.s32.totalorder %s134, %s136
      %p140 = scmp.eq.s32.totalorder %s25, 0
      %p141 = por %p139, %p140
      %p142 = scmp.ne.s32.totalorder %s134, %s136
      %p143 = scmp.eq.s32.totalorder %s30, 1
      %p144 = por %p142, %p143
      %p145 = scmp.ne.s32.totalorder %s136, %s137
      %p146 = scmp.eq.s32.totalorder %s30, 0
      %p147 = por %p145, %p146
      %p148 = scmp.ne.s32.totalorder %s136, %s137
      %p149 = scmp.eq.s32.totalorder %s31, 1
      %p150 = por %p148, %p149
      %p152 = scmp.ne.s32.totalorder %s137, %s151
      %p153 = scmp.eq.s32.totalorder %s31, 0
      %p154 = por %p152, %p153
      %s156 = sadd.s32 %s155, 1
      %p159 = scmp.eq.s32.totalorder %s25, 1
      %p160 = scmp.ne.s32.totalorder %s155, %s157
      %p161 = scmp.eq.s32.totalorder %s25, 0
      %p162 = por %p160, %p161
      %p163 = scmp.ne.s32.totalorder %s155, %s157
      %p164 = scmp.eq.s32.totalorder %s30, 1
      %p165 = por %p163, %p164
      %p166 = scmp.ne.s32.totalorder %s157, %s158
      %p167 = scmp.eq.s32.totalorder %s30, 0
      %p168 = por %p166, %p167
      %p169 = scmp.ne.s32.totalorder %s157, %s158
      %p170 = scmp.eq.s32.totalorder %s31, 1
      %p171 = por %p169, %p170
      %p173 = scmp.ne.s32.totalorder %s158, %s172
      %p174 = scmp.eq.s32.totalorder %s31, 0
      %p175 = por %p173, %p174
      %s177 = sadd.s32 %s176, 1
      %p180 = scmp.eq.s32.totalorder %s25, 1
      %p181 = scmp.ne.s32.totalorder %s176, %s178
      %p182 = scmp.eq.s32.totalorder %s25, 0
      %p183 = por %p181, %p182
      %p184 = scmp.ne.s32.totalorder %s176, %s178
      %p185 = scmp.eq.s32.totalorder %s30, 1
      %p186 = por %p184, %p185
      %p187 = scmp.ne.s32.totalorder %s178, %s179
      %p188 = scmp.eq.s32.totalorder %s30, 0
      %p189 = por %p187, %p188
      %p190 = scmp.ne.s32.totalorder %s178, %s179
      %p191 = scmp.eq.s32.totalorder %s31, 1
      %p192 = por %p190, %p191
      %p194 = scmp.ne.s32.totalorder %s179, %s193
      %p195 = scmp.eq.s32.totalorder %s31, 0
      %p196 = por %p194, %p195
      %s198 = sadd.s32 %s197, 1
      %p201 = scmp.eq.s32.totalorder %s25, 1
      %p202 = scmp.ne.s32.totalorder %s197, %s199
      %p203 = scmp.eq.s32.totalorder %s25, 0
      %p204 = por %p202, %p203
      %p205 = scmp.ne.s32.totalorder %s197, %s199
      %p206 = scmp.eq.s32.totalorder %s30, 1
      %p207 = por %p205, %p206
      %p208 = scmp.ne.s32.totalorder %s199, %s200
      %p209 = scmp.eq.s32.totalorder %s30, 0
      %p210 = por %p208, %p209
      %p211 = scmp.ne.s32.totalorder %s199, %s200
      %p212 = scmp.eq.s32.totalorder %s31, 1
      %p213 = por %p211, %p212
      %p215 = scmp.ne.s32.totalorder %s200, %s214
      %p216 = scmp.eq.s32.totalorder %s31, 0
      %p217 = por %p215, %p216
      %s219 = sadd.s32 %s218, 1
      %p222 = scmp.eq.s32.totalorder %s25, 1
      %p223 = scmp.ne.s32.totalorder %s218, %s220
      %p224 = scmp.eq.s32.totalorder %s25, 0
      %p225 = por %p223, %p224
      %p226 = scmp.ne.s32.totalorder %s218, %s220
      %p227 = scmp.eq.s32.totalorder %s30, 1
      %p228 = por %p226, %p227
      %p229 = scmp.ne.s32.totalorder %s220, %s221
      %p230 = scmp.eq.s32.totalorder %s30, 0
      %p231 = por %p229, %p230
      %p232 = scmp.ne.s32.totalorder %s220, %s221
      %p233 = scmp.eq.s32.totalorder %s31, 1
      %p234 = por %p232, %p233
      %p236 = scmp.ne.s32.totalorder %s221, %s235
      %p237 = scmp.eq.s32.totalorder %s31, 0
      %p238 = por %p236, %p237
      %s240 = sadd.s32 %s239, 1
      %p243 = scmp.eq.s32.totalorder %s25, 1
      %p244 = scmp.ne.s32.totalorder %s239, %s241
      %p245 = scmp.eq.s32.totalorder %s25, 0
      %p246 = por %p244, %p245
      %p247 = scmp.ne.s32.totalorder %s239, %s241
      %p248 = scmp.eq.s32.totalorder %s30, 1
      %p249 = por %p247, %p248
      %p250 = scmp.ne.s32.totalorder %s241, %s242
      %p251 = scmp.eq.s32.totalorder %s30, 0
      %p252 = por %p250, %p251
      %p253 = scmp.ne.s32.totalorder %s241, %s242
      %p254 = scmp.eq.s32.totalorder %s31, 1
      %p255 = por %p253, %p254
      %p257 = scmp.ne.s32.totalorder %s242, %s256
      %p258 = scmp.eq.s32.totalorder %s31, 0
      %p259 = por %p257, %p258
      %s261 = sadd.s32 %s260, 1
      %p264 = scmp.eq.s32.totalorder %s25, 1
      %p265 = scmp.ne.s32.totalorder %s260, %s262
      %p266 = scmp.eq.s32.totalorder %s25, 0
      %p267 = por %p265, %p266
      %p268 = scmp.ne.s32.totalorder %s260, %s262
      %p269 = scmp.eq.s32.totalorder %s30, 1
      %p270 = por %p268, %p269
      %p271 = scmp.ne.s32.totalorder %s262, %s263
      %p272 = scmp.eq.s32.totalorder %s30, 0
      %p273 = por %p271, %p272
      %p274 = scmp.ne.s32.totalorder %s262, %s263
      %p275 = scmp.eq.s32.totalorder %s31, 1
      %p276 = por %p274, %p275
      %p278 = scmp.ne.s32.totalorder %s263, %s277
      %p279 = scmp.eq.s32.totalorder %s31, 0
      %p280 = por %p278, %p279
      %s282 = sadd.s32 %s281, 1
      %p285 = scmp.eq.s32.totalorder %s25, 1
      %p286 = scmp.ne.s32.totalorder %s281, %s283
      %p287 = scmp.eq.s32.totalorder %s25, 0
      %p288 = por %p286, %p287
      %p289 = scmp.ne.s32.totalorder %s281, %s283
      %p290 = scmp.eq.s32.totalorder %s30, 1
      %p291 = por %p289, %p290
      %p292 = scmp.ne.s32.totalorder %s283, %s284
      %p293 = scmp.eq.s32.totalorder %s30, 0
      %p294 = por %p292, %p293
      %p295 = scmp.ne.s32.totalorder %s283, %s284
      %p296 = scmp.eq.s32.totalorder %s31, 1
      %p297 = por %p295, %p296
      %p299 = scmp.ne.s32.totalorder %s284, %s298
      %p300 = scmp.eq.s32.totalorder %s31, 0
      %p301 = por %p299, %p300
      %s303 = sadd.s32 %s302, 1
      %p306 = scmp.eq.s32.totalorder %s25, 1
      %p307 = scmp.ne.s32.totalorder %s302, %s304
      %p308 = scmp.eq.s32.totalorder %s25, 0
      %p309 = por %p307, %p308
      %p310 = scmp.ne.s32.totalorder %s302, %s304
      %p311 = scmp.eq.s32.totalorder %s30, 1
      %p312 = por %p310, %p311
      %p313 = scmp.ne.s32.totalorder %s304, %s305
      %p314 = scmp.eq.s32.totalorder %s30, 0
      %p315 = por %p313, %p314
      %p316 = scmp.ne.s32.totalorder %s304, %s305
      %p317 = scmp.eq.s32.totalorder %s31, 1
      %p318 = por %p316, %p317
      %p320 = scmp.ne.s32.totalorder %s305, %s319
      %p321 = scmp.eq.s32.totalorder %s31, 0
      %p322 = por %p320, %p321
      %s324 = sadd.s32 %s323, 1
      %p327 = scmp.eq.s32.totalorder %s25, 1
      %p328 = scmp.ne.s32.totalorder %s323, %s325
      %p329 = scmp.eq.s32.totalorder %s25, 0
      %p330 = por %p328, %p329
      %p331 = scmp.ne.s32.totalorder %s323, %s325
      %p332 = scmp.eq.s32.totalorder %s30, 1
      %p333 = por %p331, %p332
      %p334 = scmp.ne.s32.totalorder %s325, %s326
      %p335 = scmp.eq.s32.totalorder %s30, 0
      %p336 = por %p334, %p335
      %p337 = scmp.ne.s32.totalorder %s325, %s326
      %p338 = scmp.eq.s32.totalorder %s31, 1
      %p339 = por %p337, %p338
      %p341 = scmp.ne.s32.totalorder %s326, %s340
      %p342 = scmp.eq.s32.totalorder %s31, 0
      %p343 = por %p341, %p342
      %s345 = sadd.s32 %s344, 1
      %p348 = scmp.eq.s32.totalorder %s25, 1
      %p349 = scmp.ne.s32.totalorder %s344, %s346
      %p350 = scmp.eq.s32.totalorder %s25, 0
      %p351 = por %p349, %p350
      %p352 = scmp.ne.s32.totalorder %s344, %s346
      %p353 = scmp.eq.s32.totalorder %s30, 1
      %p354 = por %p352, %p353
      %p355 = scmp.ne.s32.totalorder %s346, %s347
      %p356 = scmp.eq.s32.totalorder %s30, 0
      %p357 = por %p355, %p356
      %p358 = scmp.ne.s32.totalorder %s346, %s347
      %p359 = scmp.eq.s32.totalorder %s31, 1
      %p360 = por %p358, %p359
      %p362 = scmp.ne.s32.totalorder %s347, %s361
      %p363 = scmp.eq.s32.totalorder %s31, 0
      %p364 = por %p362, %p363
      %s366 = sadd.s32 %s365, 1
      %p369 = scmp.eq.s32.totalorder %s25, 1
      %p370 = scmp.ne.s32.totalorder %s365, %s367
      %p371 = scmp.eq.s32.totalorder %s25, 0
      %p372 = por %p370, %p371
      %p373 = scmp.ne.s32.totalorder %s365, %s367
      %p374 = scmp.eq.s32.totalorder %s30, 1
      %p375 = por %p373, %p374
      %p376 = scmp.ne.s32.totalorder %s367, %s368
      %p377 = scmp.eq.s32.totalorder %s30, 0
      %p378 = por %p376, %p377
      %p379 = scmp.ne.s32.totalorder %s367, %s368
      %p380 = scmp.eq.s32.totalorder %s31, 1
      %p381 = por %p379, %p380
      %p383 = scmp.ne.s32.totalorder %s368, %s382
      %p384 = scmp.eq.s32.totalorder %s31, 0
      %p385 = por %p383, %p384
      %s386 = ssub.s32 %s32, %s44
      %s387 = ssub.s32 %s33, %s40
      %s388 = sor.u32 %s386, %s387
      %p389 = scmp.eq.s32.totalorder %s388, 0
      %s391 = sadd.s32 %s390, 1
      %s392 = scalar_select %p389, %s390, %s391
      %p395 = pneg %p389
      %p396 = scmp.eq.s32.totalorder %s25, 1
      %p397 = por %p395, %p396
      %p398 = scmp.ne.s32.totalorder %s390, %s393
      %p399 = scmp.eq.s32.totalorder %s25, 0
      %p400 = por %p398, %p399
      %p401 = scmp.ne.s32.totalorder %s390, %s393
      %p402 = scmp.eq.s32.totalorder %s30, 1
      %p403 = por %p401, %p402
      %p404 = scmp.ne.s32.totalorder %s393, %s394
      %p405 = scmp.eq.s32.totalorder %s30, 0
      %p406 = por %p404, %p405
      %p407 = scmp.ne.s32.totalorder %s393, %s394
      %p408 = scmp.eq.s32.totalorder %s31, 1
      %p409 = por %p407, %p408
      %p411 = scmp.ne.s32.totalorder %s394, %s410
      %p412 = scmp.eq.s32.totalorder %s31, 0
      %p413 = por %p411, %p412
      %p414 = scmp.le.s32.totalorder 1, %s25
      %p415 = scmp.lt.s32.totalorder %s25, 3
      %p416 = pnand %p414, %p415
      %p417 = pneg %p416
      // Predicated region
      $region9: #{tpu_custom_call.1} parent=5 // pred_check
        _
      $region10: #{tpu_custom_call.1} parent=5 // pred_check_branch
        %419 = sbr.rel (%p416) target = $region12
      $region11: #{tpu_custom_call.1} parent=5 // pred_region
        %s420 = ssub.s32 %s25, 1
        // Predicated region
        $region13: #{tpu_custom_call.1} parent=11 // pred_check
          %p421 = pneg %p84
        $region14: #{tpu_custom_call.1} parent=11 // pred_check_branch
          %423 = sbr.rel (%p421) target = $region16
        $region15: #{tpu_custom_call.1} parent=11 // pred_region
          _
        $region16: #{tpu_custom_call.1} parent=11 // pred_fallthru
          _
        // Predicated region
        $region17: #{tpu_custom_call.1} parent=11 // pred_check
          %p424 = pneg %p105
        $region18: #{tpu_custom_call.1} parent=11 // pred_check_branch
          %426 = sbr.rel (%p424) target = $region20
        $region19: #{tpu_custom_call.1} parent=11 // pred_region
          _
        $region20: #{tpu_custom_call.1} parent=11 // pred_fallthru
          _
        // Predicated region
        $region21: #{tpu_custom_call.1} parent=11 // pred_check
          %p427 = pneg %p126
        $region22: #{tpu_custom_call.1} parent=11 // pred_check_branch
          %429 = sbr.rel (%p427) target = $region24
        $region23: #{tpu_custom_call.1} parent=11 // pred_region
          _
        $region24: #{tpu_custom_call.1} parent=11 // pred_fallthru
          _
        // Predicated region
        $region25: #{tpu_custom_call.1} parent=11 // pred_check
          %p430 = pneg %p147
        $region26: #{tpu_custom_call.1} parent=11 // pred_check_branch
          %432 = sbr.rel (%p430) target = $region28
        $region27: #{tpu_custom_call.1} parent=11 // pred_region
          _
        $region28: #{tpu_custom_call.1} parent=11 // pred_fallthru
          _
        // Predicated region
        $region29: #{tpu_custom_call.1} parent=11 // pred_check
          %p433 = pneg %p168
        $region30: #{tpu_custom_call.1} parent=11 // pred_check_branch
          %435 = sbr.rel (%p433) target = $region32
        $region31: #{tpu_custom_call.1} parent=11 // pred_region
          _
        $region32: #{tpu_custom_call.1} parent=11 // pred_fallthru
          _
        // Predicated region
        $region33: #{tpu_custom_call.1} parent=11 // pred_check
          %p436 = pneg %p189
        $region34: #{tpu_custom_call.1} parent=11 // pred_check_branch
          %438 = sbr.rel (%p436) target = $region36
        $region35: #{tpu_custom_call.1} parent=11 // pred_region
          _
        $region36: #{tpu_custom_call.1} parent=11 // pred_fallthru
          _
        // Predicated region
        $region37: #{tpu_custom_call.1} parent=11 // pred_check
          %p439 = pneg %p210
        $region38: #{tpu_custom_call.1} parent=11 // pred_check_branch
          %441 = sbr.rel (%p439) target = $region40
        $region39: #{tpu_custom_call.1} parent=11 // pred_region
          _
        $region40: #{tpu_custom_call.1} parent=11 // pred_fallthru
          _
        // Predicated region
        $region41: #{tpu_custom_call.1} parent=11 // pred_check
          %p442 = pneg %p231
        $region42: #{tpu_custom_call.1} parent=11 // pred_check_branch
          %444 = sbr.rel (%p442) target = $region44
        $region43: #{tpu_custom_call.1} parent=11 // pred_region
          _
        $region44: #{tpu_custom_call.1} parent=11 // pred_fallthru
          _
        // Predicated region
        $region45: #{tpu_custom_call.1} parent=11 // pred_check
          %p445 = pneg %p252
        $region46: #{tpu_custom_call.1} parent=11 // pred_check_branch
          %447 = sbr.rel (%p445) target = $region48
        $region47: #{tpu_custom_call.1} parent=11 // pred_region
          _
        $region48: #{tpu_custom_call.1} parent=11 // pred_fallthru
          _
        // Predicated region
        $region49: #{tpu_custom_call.1} parent=11 // pred_check
          %p448 = pneg %p273
        $region50: #{tpu_custom_call.1} parent=11 // pred_check_branch
          %450 = sbr.rel (%p448) target = $region52
        $region51: #{tpu_custom_call.1} parent=11 // pred_region
          _
        $region52: #{tpu_custom_call.1} parent=11 // pred_fallthru
          _
        // Predicated region
        $region53: #{tpu_custom_call.1} parent=11 // pred_check
          %p451 = pneg %p294
        $region54: #{tpu_custom_call.1} parent=11 // pred_check_branch
          %453 = sbr.rel (%p451) target = $region56
        $region55: #{tpu_custom_call.1} parent=11 // pred_region
          _
        $region56: #{tpu_custom_call.1} parent=11 // pred_fallthru
          _
        // Predicated region
        $region57: #{tpu_custom_call.1} parent=11 // pred_check
          %p454 = pneg %p315
        $region58: #{tpu_custom_call.1} parent=11 // pred_check_branch
          %456 = sbr.rel (%p454) target = $region60
        $region59: #{tpu_custom_call.1} parent=11 // pred_region
          _
        $region60: #{tpu_custom_call.1} parent=11 // pred_fallthru
          _
        // Predicated region
        $region61: #{tpu_custom_call.1} parent=11 // pred_check
          %p457 = pneg %p336
        $region62: #{tpu_custom_call.1} parent=11 // pred_check_branch
          %459 = sbr.rel (%p457) target = $region64
        $region63: #{tpu_custom_call.1} parent=11 // pred_region
          _
        $region64: #{tpu_custom_call.1} parent=11 // pred_fallthru
          _
        // Predicated region
        $region65: #{tpu_custom_call.1} parent=11 // pred_check
          %p460 = pneg %p357
        $region66: #{tpu_custom_call.1} parent=11 // pred_check_branch
          %462 = sbr.rel (%p460) target = $region68
        $region67: #{tpu_custom_call.1} parent=11 // pred_region
          _
        $region68: #{tpu_custom_call.1} parent=11 // pred_fallthru
          _
        // Predicated region
        $region69: #{tpu_custom_call.1} parent=11 // pred_check
          %p463 = pneg %p378
        $region70: #{tpu_custom_call.1} parent=11 // pred_check_branch
          %465 = sbr.rel (%p463) target = $region72
        $region71: #{tpu_custom_call.1} parent=11 // pred_region
          _
        $region72: #{tpu_custom_call.1} parent=11 // pred_fallthru
          _
      $region12: #{tpu_custom_call.1} parent=5 // pred_fallthru
        _
      %p466 = scmp.lt.s32.totalorder %s25, 2
      // Predicated region
      $region73: #{tpu_custom_call.1} parent=5 // pred_check
        %p467 = pneg %p466
      $region74: #{tpu_custom_call.1} parent=5 // pred_check_branch
        %469 = sbr.rel (%p467) target = $region76
      $region75: #{tpu_custom_call.1} parent=5 // pred_region
        // Predicated region
        $region77: #{tpu_custom_call.1} parent=75 // pred_check
          %p470 = pneg %p57
        $region78: #{tpu_custom_call.1} parent=75 // pred_check_branch
          %472 = sbr.rel (%p470) target = $region80
        $region79: #{tpu_custom_call.1} parent=75 // pred_region
          %p473 = scmp.lt.s32.totalorder %s32, 1
          %s474 = scalar_select %p473, %s32, 1
          %s475 = smul.addr %s474, 8
          %s476 = scalar_lea.vmem %s0, %s475
        $region80: #{tpu_custom_call.1} parent=75 // pred_fallthru
          _
      $region76: #{tpu_custom_call.1} parent=5 // pred_fallthru
        _
      %p477 = scmp.le.s32.totalorder 1, %s25
      %p478 = scmp.lt.s32.totalorder %s25, 3
      %p479 = pnand %p477, %p478
      %p480 = pneg %p479
      // Predicated region
      $region81: #{tpu_custom_call.1} parent=5 // pred_check
        _
      $region82: #{tpu_custom_call.1} parent=5 // pred_check_branch
        %482 = sbr.rel (%p479) target = $region84
      $region83: #{tpu_custom_call.1} parent=5 // pred_region
        %s483 = ssub.s32 %s25, 1
        %p484 = scmp.lt.s32.totalorder %s34, 1
        %s485 = scalar_select %p484, %s34, 1
        %s486 = smul.addr %s485, 8
        %s487 = scalar_lea.vmem %s0, %s486
        %p488 = pneg %p63
        %p489 = pneg %p60
        %p490 = pneg %p84
        %p491 = pneg %p81
        %p492 = pneg %p105
        %p493 = pneg %p102
        %p494 = pneg %p126
        %p495 = pneg %p123
        %p496 = pneg %p147
        %p497 = pneg %p144
        %p498 = pneg %p168
        %p499 = pneg %p165
        %p500 = pneg %p189
        %p501 = pneg %p186
        %p502 = pneg %p210
        %p503 = pneg %p207
        %p504 = pneg %p231
        %p505 = pneg %p228
        %p506 = pneg %p252
        %p507 = pneg %p249
        %p508 = pneg %p273
        %p509 = pneg %p270
        %p510 = pneg %p294
        %p511 = pneg %p291
        %p512 = pneg %p315
        %p513 = pneg %p312
        %p514 = pneg %p336
        %p515 = pneg %p333
        %p516 = pneg %p357
        %p517 = pneg %p354
        %p518 = pneg %p378
        %p519 = pneg %p375
        %p520 = pneg %p406
        %p521 = pneg %p403
        %s522 = sand.u32 %s393, 1
        %s523 = scalar_lea.sflag [#allocation5], %s522
        %s524 = sand.u32 %s393, 1
        %s525 = smul.addr %s524, 8
        %s526 = scalar_lea.vmem [#allocation4], %s525
        %p527 = scmp.lt.s32.totalorder %s34, 1
        %s528 = scalar_select %p527, %s34, 1
        %s529 = smul.addr %s528, 8
        %s530 = scalar_lea.vmem %s0, %s529
        %p532 = scmp.eq.s32.totalorder %s35, 0
        // Predicated region
        $region85: #{tpu_custom_call.1} parent=83 // pred_check
          %p533 = pneg %p532
        $region86: #{tpu_custom_call.1} parent=83 // pred_check_branch
          %535 = sbr.rel (%p533) target = $region88
        $region87: #{tpu_custom_call.1} parent=83 // pred_region
          %v536 = vld [vmem:[%s530] sm:$0xff]
          %v537 = vpack.c.bf16 %v536, %v536
          %v538 = vld [vmem:[%s4] sm:$0xf]
          %v539 = vld [vmem:[%s4 + $0x4] sm:$0xf]
          %v540 = vld [vmem:[%s4 + $0x8] sm:$0xf]
          %v541 = vld [vmem:[%s4 + $0xc] sm:$0xf]
          %v542 = vld [vmem:[%s5] sm:$0x1]
          %v544 = vlaneseq
          %v545 = vshrl.u32 %v544, 7
          %v546 = vsub.s32 0, %v545
          %v547 = vrot.slane %v542, %v546
          %v553 = vunpack.c.l.b16 %v538
          %v554 = vunpack.c.l.b16 %v539
          %v555 = vunpack.c.l.b16 %v540
          %v556 = vunpack.c.l.b16 %v541
          %v557 = vpack.c.b16 %v554, %v553
          %v558 = vpack.c.b16 %v556, %v555
          %vm561 = vcmask 261120
          %v563 = vsel %vm561, %v537, 0
          %565 = vmatprep.subr.bf16.mxu0 0
          %566 = vmatpush1.bf16.msra.mxu0 %v557
          %567 = vmatprep.subr.bf16.mxu0 0
          %568 = vmatpush1.bf16.msra.mxu0 %v558
          %569 = vmatprep.subr.bf16.mxu0 0
          %570 = vmatpush1.bf16.msra.mxu0 0
          %571 = vmatprep.subr.bf16.mxu0 0
          %572 = vmatpush1.bf16.msra.mxu0 0
          %573 = vmatprep.subr.bf16.mxu0 0
          %574 = vmatpush1.bf16.msra.mxu0 0
          %575 = vmatprep.subr.bf16.mxu0 0
          %576 = vmatpush1.bf16.msra.mxu0 0
          %577 = vmatprep.subr.bf16.mxu0 0
          %578 = vmatpush1.bf16.msra.mxu0 0
          %579 = vmatprep.subr.bf16.mxu0 0
          %580 = vmatpush1.bf16.msra.mxu0 0
          %581 = vmatprep.subr.bf16.mxu0 0
          %582 = vmatpush1.bf16.msra.mxu0 0
          %583 = vmatprep.subr.bf16.mxu0 0
          %584 = vmatpush1.bf16.msra.mxu0 0
          %585 = vmatprep.subr.bf16.mxu0 0
          %586 = vmatpush1.bf16.msra.mxu0 0
          %587 = vmatprep.subr.bf16.mxu0 0
          %588 = vmatpush1.bf16.msra.mxu0 0
          %589 = vmatprep.subr.bf16.mxu0 0
          %590 = vmatpush1.bf16.msra.mxu0 0
          %591 = vmatprep.subr.bf16.mxu0 0
          %592 = vmatpush1.bf16.msra.mxu0 0
          %593 = vmatprep.subr.bf16.mxu0 0
          %594 = vmatpush1.bf16.msra.mxu0 0
          %595 = vmatprep.subr.bf16.mxu0 0
          %596 = vmatpush1.bf16.msra.mxu0 0
          %597 = vmatprep.mubr.bf16.mxu0 0
          %598 = vmatmul.mubr.bf16.gmra.mrb[0].mxu0 %v563
          %v599 = vpop.f32.mrb[0].mxu0
          %v600 = vadd.f32 %v547, %v599
          %v601 = vpop.f32.mrb[0].mxu0
          %v602 = vpop.f32.mrb[0].mxu0
          %v603 = vpop.f32.mrb[0].mxu0
          %604 = vdwg.mxu0
          %v605 = vpack.c.bf16 %v600, %v600
          %vm606 = vcmask 257024
          %607 = vst.msk [vmem:[#allocation2] sm:$0xf] %vm606, %v605
          %v609 = vunpack.c.l.b16 %v605
          %v610 = vpack.c.b16 %v609, %v609
          %611 = vrot.lane.b32.xlu0 %v610, 96
          %v612 = vpop.permute.xlu0 %611
          %614 = vst.msk [vmem:[#allocation3] sm:$0xf] %vm606, %v612
        $region88: #{tpu_custom_call.1} parent=83 // pred_fallthru
          _
        %v615 = vld [vmem:[%s530] sm:$0xff]
        %v616 = vpack.c.bf16 %v615, %v615
        %v617 = vld [vmem:[%s2] sm:$0xf]
        %v618 = vld [vmem:[%s2 + $0x4] sm:$0xf]
        %v619 = vld [vmem:[%s2 + $0x8] sm:$0xf]
        %v620 = vld [vmem:[%s2 + $0xc] sm:$0xf]
        %v621 = vld [vmem:[%s3] sm:$0x1]
        %v623 = vlaneseq
        %v624 = vshrl.u32 %v623, 7
        %v625 = vsub.s32 0, %v624
        %v626 = vrot.slane %v621, %v625
        %v632 = vunpack.c.l.b16 %v617
        %v633 = vunpack.c.l.b16 %v618
        %v634 = vunpack.c.l.b16 %v619
        %v635 = vunpack.c.l.b16 %v620
        %v636 = vpack.c.b16 %v633, %v632
        %v637 = vpack.c.b16 %v635, %v634
        %vm640 = vcmask 261120
        %v642 = vsel %vm640, %v616, 0
        %644 = vmatprep.subr.bf16.mxu0 0
        %645 = vmatpush1.bf16.msra.mxu0 %v636
        %646 = vmatprep.subr.bf16.mxu0 0
        %647 = vmatpush1.bf16.msra.mxu0 %v637
        %648 = vmatprep.subr.bf16.mxu0 0
        %649 = vmatpush1.bf16.msra.mxu0 0
        %650 = vmatprep.subr.bf16.mxu0 0
        %651 = vmatpush1.bf16.msra.mxu0 0
        %652 = vmatprep.subr.bf16.mxu0 0
        %653 = vmatpush1.bf16.msra.mxu0 0
        %654 = vmatprep.subr.bf16.mxu0 0
        %655 = vmatpush1.bf16.msra.mxu0 0
        %656 = vmatprep.subr.bf16.mxu0 0
        %657 = vmatpush1.bf16.msra.mxu0 0
        %658 = vmatprep.subr.bf16.mxu0 0
        %659 = vmatpush1.bf16.msra.mxu0 0
        %660 = vmatprep.subr.bf16.mxu0 0
        %661 = vmatpush1.bf16.msra.mxu0 0
        %662 = vmatprep.subr.bf16.mxu0 0
        %663 = vmatpush1.bf16.msra.mxu0 0
        %664 = vmatprep.subr.bf16.mxu0 0
        %665 = vmatpush1.bf16.msra.mxu0 0
        %666 = vmatprep.subr.bf16.mxu0 0
        %667 = vmatpush1.bf16.msra.mxu0 0
        %668 = vmatprep.subr.bf16.mxu0 0
        %669 = vmatpush1.bf16.msra.mxu0 0
        %670 = vmatprep.subr.bf16.mxu0 0
        %671 = vmatpush1.bf16.msra.mxu0 0
        %672 = vmatprep.subr.bf16.mxu0 0
        %673 = vmatpush1.bf16.msra.mxu0 0
        %674 = vmatprep.subr.bf16.mxu0 0
        %675 = vmatpush1.bf16.msra.mxu0 0
        %676 = vmatprep.mubr.bf16.mxu0 0
        %677 = vmatmul.mubr.bf16.gmra.mrb[0].mxu0 %v642
        %v678 = vpop.f32.mrb[0].mxu0
        %v679 = vadd.f32 %v626, %v678
        %v680 = vpop.f32.mrb[0].mxu0
        %v681 = vpop.f32.mrb[0].mxu0
        %v682 = vpop.f32.mrb[0].mxu0
        %683 = vdwg.mxu0
        %v684 = vld [vmem:[#allocation2] sm:$0xf]
        %v685 = vld [vmem:[#allocation3] sm:$0xf]
        %v686 = vld [vmem:[%s1] sm:$0xf]
        %v687 = vld [vmem:[%s1 + $0x4] sm:$0xf]
        %v688 = vld [vmem:[%s1 + $0x8] sm:$0xf]
        %v689 = vld [vmem:[%s1 + $0xc] sm:$0xf]
        %v690 = vld [vmem:[%s1 + $0x10] sm:$0xf]
        %v691 = vld [vmem:[%s1 + $0x14] sm:$0xf]
        %v692 = vld [vmem:[%s1 + $0x18] sm:$0xf]
        %v693 = vld [vmem:[%s1 + $0x1c] sm:$0xf]
        %v694 = vld [vmem:[%s1 + $0x20] sm:$0xf]
        %v695 = vld [vmem:[%s1 + $0x24] sm:$0xf]
        %v696 = vld [vmem:[%s1 + $0x28] sm:$0xf]
        %v697 = vld [vmem:[%s1 + $0x2c] sm:$0xf]
        %v698 = vld [vmem:[%s1 + $0x30] sm:$0xf]
        %v699 = vld [vmem:[%s1 + $0x34] sm:$0xf]
        %v700 = vld [vmem:[%s1 + $0x38] sm:$0xf]
        %v701 = vld [vmem:[%s1 + $0x3c] sm:$0xf]
        %v702 = vld [vmem:[%s7] sm:$0x1]
        %v704 = vlaneseq
        %v705 = vshrl.u32 %v704, 7
        %v706 = vsub.s32 0, %v705
        %v707 = vrot.slane %v702, %v706
        %v709 = vadd.f32 %v707, 0.0
        %v710 = vpack.c.bf16 %v679, %v679
        %v727 = vunpack.c.l.b16 %v686
        %v728 = vunpack.c.l.b16 %v687
        %v729 = vunpack.c.l.b16 %v688
        %v730 = vunpack.c.l.b16 %v689
        %v731 = vunpack.c.l.b16 %v690
        %v732 = vunpack.c.l.b16 %v691
        %v733 = vunpack.c.l.b16 %v692
        %v734 = vunpack.c.l.b16 %v693
        %v735 = vunpack.c.l.b16 %v694
        %v736 = vunpack.c.l.b16 %v695
        %v737 = vunpack.c.l.b16 %v696
        %v738 = vunpack.c.l.b16 %v697
        %v739 = vunpack.c.l.b16 %v698
        %v740 = vunpack.c.l.b16 %v699
        %v741 = vunpack.c.l.b16 %v700
        %v742 = vunpack.c.l.b16 %v701
        %v743 = vpack.c.b16 %v728, %v727
        %v744 = vpack.c.b16 %v730, %v729
        %v745 = vpack.c.b16 %v732, %v731
        %v746 = vpack.c.b16 %v734, %v733
        %v747 = vpack.c.b16 %v736, %v735
        %v748 = vpack.c.b16 %v738, %v737
        %v749 = vpack.c.b16 %v740, %v739
        %v750 = vpack.c.b16 %v742, %v741
        %vm751 = vcmask 64512
        %v753 = vsel %vm751, %v710, 0
        %v756 = vsel %vm751, %v743, 0
        %v759 = vsel %vm751, %v744, 0
        %v762 = vsel %vm751, %v745, 0
        %v765 = vsel %vm751, %v746, 0
        %v768 = vsel %vm751, %v747, 0
        %v771 = vsel %vm751, %v748, 0
        %v774 = vsel %vm751, %v749, 0
        %v777 = vsel %vm751, %v750, 0
        %779 = vmatprep.subr.bf16.mxu0 0
        %780 = vmatpush1.bf16.xpose.msra.mxu0 %v756
        %781 = vmatprep.subr.bf16.mxu0 0
        %782 = vmatpush1.bf16.xpose.msra.mxu0 %v759
        %783 = vmatprep.subr.bf16.mxu0 0
        %784 = vmatpush1.bf16.xpose.msra.mxu0 %v762
        %785 = vmatprep.subr.bf16.mxu0 0
        %786 = vmatpush1.bf16.xpose.msra.mxu0 %v765
        %787 = vmatprep.subr.bf16.mxu0 0
        %788 = vmatpush1.bf16.xpose.msra.mxu0 %v768
        %789 = vmatprep.subr.bf16.mxu0 0
        %790 = vmatpush1.bf16.xpose.msra.mxu0 %v771
        %791 = vmatprep.subr.bf16.mxu0 0
        %792 = vmatpush1.bf16.xpose.msra.mxu0 %v774
        %793 = vmatprep.subr.bf16.mxu0 0
        %794 = vmatpush1.bf16.xpose.msra.mxu0 %v777
        %795 = vmatprep.subr.bf16.mxu0 0
        %796 = vmatpush1.bf16.xpose.msra.mxu0 0
        %797 = vmatprep.subr.bf16.mxu0 0
        %798 = vmatpush1.bf16.xpose.msra.mxu0 0
        %799 = vmatprep.subr.bf16.mxu0 0
        %800 = vmatpush1.bf16.xpose.msra.mxu0 0
        %801 = vmatprep.subr.bf16.mxu0 0
        %802 = vmatpush1.bf16.xpose.msra.mxu0 0
        %803 = vmatprep.subr.bf16.mxu0 0
        %804 = vmatpush1.bf16.xpose.msra.mxu0 0
        %805 = vmatprep.subr.bf16.mxu0 0
        %806 = vmatpush1.bf16.xpose.msra.mxu0 0
        %807 = vmatprep.subr.bf16.mxu0 0
        %808 = vmatpush1.bf16.xpose.msra.mxu0 0
        %809 = vmatprep.subr.bf16.mxu0 0
        %810 = vmatpush1.bf16.xpose.msra.mxu0 0
        %811 = vmatprep.mubr.bf16.mxu0 0
        %812 = vmatmul.mubr.bf16.gmra.mrb[0].mxu0 %v753
        %v813 = vpop.f32.mrb[0].mxu0
        %v814 = vadd.f32 0.0, %v813
        %v815 = vpop.f32.mrb[0].mxu0
        %v816 = vpop.f32.mrb[0].mxu0
        %v817 = vpop.f32.mrb[0].mxu0
        %818 = vdwg.mxu0
        %820 = vrot.lane.b32.xlu0 %v814, 256
        %v821 = vpop.permute.xlu0 %820
        %823 = vrot.lane.b32.xlu0 %v821, 121
        %v824 = vpop.permute.xlu0 %823
        %v827 = vsel %vm751, %v684, 0
        %829 = vmatprep.subr.bf16.mxu0 0
        %830 = vmatpush1.bf16.xpose.msra.mxu0 %v827
        %831 = vmatprep.subr.bf16.mxu0 0
        %832 = vmatpush1.bf16.xpose.msra.mxu0 0
        %833 = vmatprep.subr.bf16.mxu0 0
        %834 = vmatpush1.bf16.xpose.msra.mxu0 0
        %835 = vmatprep.subr.bf16.mxu0 0
        %836 = vmatpush1.bf16.xpose.msra.mxu0 0
        %837 = vmatprep.subr.bf16.mxu0 0
        %838 = vmatpush1.bf16.xpose.msra.mxu0 0
        %839 = vmatprep.subr.bf16.mxu0 0
        %840 = vmatpush1.bf16.xpose.msra.mxu0 0
        %841 = vmatprep.subr.bf16.mxu0 0
        %842 = vmatpush1.bf16.xpose.msra.mxu0 0
        %843 = vmatprep.subr.bf16.mxu0 0
        %844 = vmatpush1.bf16.xpose.msra.mxu0 0
        %845 = vmatprep.subr.bf16.mxu0 0
        %846 = vmatpush1.bf16.xpose.msra.mxu0 0
        %847 = vmatprep.subr.bf16.mxu0 0
        %848 = vmatpush1.bf16.xpose.msra.mxu0 0
        %849 = vmatprep.subr.bf16.mxu0 0
        %850 = vmatpush1.bf16.xpose.msra.mxu0 0
        %851 = vmatprep.subr.bf16.mxu0 0
        %852 = vmatpush1.bf16.xpose.msra.mxu0 0
        %853 = vmatprep.subr.bf16.mxu0 0
        %854 = vmatpush1.bf16.xpose.msra.mxu0 0
        %855 = vmatprep.subr.bf16.mxu0 0
        %856 = vmatpush1.bf16.xpose.msra.mxu0 0
        %857 = vmatprep.subr.bf16.mxu0 0
        %858 = vmatpush1.bf16.xpose.msra.mxu0 0
        %859 = vmatprep.subr.bf16.mxu0 0
        %860 = vmatpush1.bf16.xpose.msra.mxu0 0
        %861 = vmatprep.mubr.bf16.mxu0 0
        %862 = vmatmul.mubr.bf16.gmra.mrb[0].mxu0 %v753
        %v863 = vpop.f32.mrb[0].mxu0
        %v864 = vadd.f32 %v824, %v863
        %v865 = vpop.f32.mrb[0].mxu0
        %v866 = vpop.f32.mrb[0].mxu0
        %v867 = vpop.f32.mrb[0].mxu0
        %868 = vdwg.mxu0
        %v869 = vsel %vm751, %v864, -inf
        %870 = vmax.xlane.f32.xlu0 %v869
        %v871 = vpop.xlane.xlu0 %870
        %v872 = vsub.f32 %v864, %v871
        %v873 = vmul.f32 %v872, 1.442695
        %v874 = vpow.pop %v873
        %v875 = vsel %vm751, %v874, 0.0
        %876 = vadd.xlane.f32.xlu0 %v875
        %v877 = vpop.xlane.xlu0 %876
        %v878 = vrcp.pop %v877
        %v879 = vmul.f32 %v874, %v878
        %v880 = vpack.c.bf16 %v879, %v879
        %v882 = vsel %vm751, %v880, 0
        %vm884 = vcmask 1043456
        %v886 = vsel %vm884, %v685, 0
        %888 = vmatprep.subr.bf16.mxu0 0
        %889 = vmatpush1.bf16.msra.mxu0 %v886
        %890 = vmatprep.subr.bf16.mxu0 0
        %891 = vmatpush1.bf16.msra.mxu0 0
        %892 = vmatprep.subr.bf16.mxu0 0
        %893 = vmatpush1.bf16.msra.mxu0 0
        %894 = vmatprep.subr.bf16.mxu0 0
        %895 = vmatpush1.bf16.msra.mxu0 0
        %896 = vmatprep.subr.bf16.mxu0 0
        %897 = vmatpush1.bf16.msra.mxu0 0
        %898 = vmatprep.subr.bf16.mxu0 0
        %899 = vmatpush1.bf16.msra.mxu0 0
        %900 = vmatprep.subr.bf16.mxu0 0
        %901 = vmatpush1.bf16.msra.mxu0 0
        %902 = vmatprep.subr.bf16.mxu0 0
        %903 = vmatpush1.bf16.msra.mxu0 0
        %904 = vmatprep.subr.bf16.mxu0 0
        %905 = vmatpush1.bf16.msra.mxu0 0
        %906 = vmatprep.subr.bf16.mxu0 0
        %907 = vmatpush1.bf16.msra.mxu0 0
        %908 = vmatprep.subr.bf16.mxu0 0
        %909 = vmatpush1.bf16.msra.mxu0 0
        %910 = vmatprep.subr.bf16.mxu0 0
        %911 = vmatpush1.bf16.msra.mxu0 0
        %912 = vmatprep.subr.bf16.mxu0 0
        %913 = vmatpush1.bf16.msra.mxu0 0
        %914 = vmatprep.subr.bf16.mxu0 0
        %915 = vmatpush1.bf16.msra.mxu0 0
        %916 = vmatprep.subr.bf16.mxu0 0
        %917 = vmatpush1.bf16.msra.mxu0 0
        %918 = vmatprep.subr.bf16.mxu0 0
        %919 = vmatpush1.bf16.msra.mxu0 0
        %920 = vmatprep.mubr.bf16.mxu0 0
        %921 = vmatmul.mubr.bf16.gmra.mrb[0].mxu0 %v882
        %v922 = vpop.f32.mrb[0].mxu0
        %v923 = vadd.f32 0.0, %v922
        %v924 = vpop.f32.mrb[0].mxu0
        %v925 = vpop.f32.mrb[0].mxu0
        %v926 = vpop.f32.mrb[0].mxu0
        %927 = vdwg.mxu0
        %v928 = vpack.c.bf16 %v923, %v923
        %v929 = vld [vmem:[%s6] sm:$0xf]
        %v931 = vsel %vm751, %v928, 0
        %v934 = vsel %vm884, %v929, 0
        %936 = vmatprep.subr.bf16.mxu0 0
        %937 = vmatpush1.bf16.msra.mxu0 %v934
        %938 = vmatprep.subr.bf16.mxu0 0
        %939 = vmatpush1.bf16.msra.mxu0 0
        %940 = vmatprep.subr.bf16.mxu0 0
        %941 = vmatpush1.bf16.msra.mxu0 0
        %942 = vmatprep.subr.bf16.mxu0 0
        %943 = vmatpush1.bf16.msra.mxu0 0
        %944 = vmatprep.subr.bf16.mxu0 0
        %945 = vmatpush1.bf16.msra.mxu0 0
        %946 = vmatprep.subr.bf16.mxu0 0
        %947 = vmatpush1.bf16.msra.mxu0 0
        %948 = vmatprep.subr.bf16.mxu0 0
        %949 = vmatpush1.bf16.msra.mxu0 0
        %950 = vmatprep.subr.bf16.mxu0 0
        %951 = vmatpush1.bf16.msra.mxu0 0
        %952 = vmatprep.subr.bf16.mxu0 0
        %953 = vmatpush1.bf16.msra.mxu0 0
        %954 = vmatprep.subr.bf16.mxu0 0
        %955 = vmatpush1.bf16.msra.mxu0 0
        %956 = vmatprep.subr.bf16.mxu0 0
        %957 = vmatpush1.bf16.msra.mxu0 0
        %958 = vmatprep.subr.bf16.mxu0 0
        %959 = vmatpush1.bf16.msra.mxu0 0
        %960 = vmatprep.subr.bf16.mxu0 0
        %961 = vmatpush1.bf16.msra.mxu0 0
        %962 = vmatprep.subr.bf16.mxu0 0
        %963 = vmatpush1.bf16.msra.mxu0 0
        %964 = vmatprep.subr.bf16.mxu0 0
        %965 = vmatpush1.bf16.msra.mxu0 0
        %966 = vmatprep.subr.bf16.mxu0 0
        %967 = vmatpush1.bf16.msra.mxu0 0
        %968 = vmatprep.mubr.bf16.mxu0 0
        %969 = vmatmul.mubr.bf16.gmra.mrb[0].mxu0 %v931
        %v970 = vpop.f32.mrb[0].mxu0
        %v971 = vadd.f32 0.0, %v970
        %v972 = vpop.f32.mrb[0].mxu0
        %v973 = vpop.f32.mrb[0].mxu0
        %v974 = vpop.f32.mrb[0].mxu0
        %975 = vdwg.mxu0
        %v976 = vadd.f32 %v709, %v971
        %978 = vrot.lane.b32.xlu0 %v710, 120
        %v979 = vpop.permute.xlu0 %978
        %v981 = vsel %vm751, %v979, 0
        %983 = vmatprep.subr.bf16.mxu0 0
        %984 = vmatpush1.bf16.xpose.msra.mxu0 %v756
        %985 = vmatprep.subr.bf16.mxu0 0
        %986 = vmatpush1.bf16.xpose.msra.mxu0 %v759
        %987 = vmatprep.subr.bf16.mxu0 0
        %988 = vmatpush1.bf16.xpose.msra.mxu0 %v762
        %989 = vmatprep.subr.bf16.mxu0 0
        %990 = vmatpush1.bf16.xpose.msra.mxu0 %v765
        %991 = vmatprep.subr.bf16.mxu0 0
        %992 = vmatpush1.bf16.xpose.msra.mxu0 %v768
        %993 = vmatprep.subr.bf16.mxu0 0
        %994 = vmatpush1.bf16.xpose.msra.mxu0 %v771
        %995 = vmatprep.subr.bf16.mxu0 0
        %996 = vmatpush1.bf16.xpose.msra.mxu0 %v774
        %997 = vmatprep.subr.bf16.mxu0 0
        %998 = vmatpush1.bf16.xpose.msra.mxu0 %v777
        %999 = vmatprep.subr.bf16.mxu0 0
        %1000 = vmatpush1.bf16.xpose.msra.mxu0 0
        %1001 = vmatprep.subr.bf16.mxu0 0
        %1002 = vmatpush1.bf16.xpose.msra.mxu0 0
        %1003 = vmatprep.subr.bf16.mxu0 0
        %1004 = vmatpush1.bf16.xpose.msra.mxu0 0
        %1005 = vmatprep.subr.bf16.mxu0 0
        %1006 = vmatpush1.bf16.xpose.msra.mxu0 0
        %1007 = vmatprep.subr.bf16.mxu0 0
        %1008 = vmatpush1.bf16.xpose.msra.mxu0 0
        %1009 = vmatprep.subr.bf16.mxu0 0
        %1010 = vmatpush1.bf16.xpose.msra.mxu0 0
        %1011 = vmatprep.subr.bf16.mxu0 0
        %1012 = vmatpush1.bf16.xpose.msra.mxu0 0
        %1013 = vmatprep.subr.bf16.mxu0 0
        %1014 = vmatpush1.bf16.xpose.msra.mxu0 0
        %1015 = vmatprep.mubr.bf16.mxu0 0
        %1016 = vmatmul.mubr.bf16.gmra.mrb[0].mxu0 %v981
        %v1017 = vpop.f32.mrb[0].mxu0
        %v1018 = vadd.f32 0.0, %v1017
        %v1019 = vpop.f32.mrb[0].mxu0
        %v1020 = vpop.f32.mrb[0].mxu0
        %v1021 = vpop.f32.mrb[0].mxu0
        %1022 = vdwg.mxu0
        %1024 = vrot.lane.b32.xlu0 %v1018, 256
        %v1025 = vpop.permute.xlu0 %1024
        %v1027 = vunpack.c.l.b16 %v684
        %v1028 = vpack.c.b16 %v1027, %v1027
        %1029 = vrot.lane.b32.xlu0 %v1028, 120
        %v1030 = vpop.permute.xlu0 %1029
        %1032 = vrot.lane.b32.xlu0 %v1025, 121
        %v1033 = vpop.permute.xlu0 %1032
        %v1036 = vsel %vm751, %v1030, 0
        %1038 = vmatprep.subr.bf16.mxu0 0
        %1039 = vmatpush1.bf16.xpose.msra.mxu0 %v1036
        %1040 = vmatprep.subr.bf16.mxu0 0
        %1041 = vmatpush1.bf16.xpose.msra.mxu0 0
        %1042 = vmatprep.subr.bf16.mxu0 0
        %1043 = vmatpush1.bf16.xpose.msra.mxu0 0
        %1044 = vmatprep.subr.bf16.mxu0 0
        %1045 = vmatpush1.bf16.xpose.msra.mxu0 0
        %1046 = vmatprep.subr.bf16.mxu0 0
        %1047 = vmatpush1.bf16.xpose.msra.mxu0 0
        %1048 = vmatprep.subr.bf16.mxu0 0
        %1049 = vmatpush1.bf16.xpose.msra.mxu0 0
        %1050 = vmatprep.subr.bf16.mxu0 0
        %1051 = vmatpush1.bf16.xpose.msra.mxu0 0
        %1052 = vmatprep.subr.bf16.mxu0 0
        %1053 = vmatpush1.bf16.xpose.msra.mxu0 0
        %1054 = vmatprep.subr.bf16.mxu0 0
        %1055 = vmatpush1.bf16.xpose.msra.mxu0 0
        %1056 = vmatprep.subr.bf16.mxu0 0
        %1057 = vmatpush1.bf16.xpose.msra.mxu0 0
        %1058 = vmatprep.subr.bf16.mxu0 0
        %1059 = vmatpush1.bf16.xpose.msra.mxu0 0
        %1060 = vmatprep.subr.bf16.mxu0 0
        %1061 = vmatpush1.bf16.xpose.msra.mxu0 0
        %1062 = vmatprep.subr.bf16.mxu0 0
        %1063 = vmatpush1.bf16.xpose.msra.mxu0 0
        %1064 = vmatprep.subr.bf16.mxu0 0
        %1065 = vmatpush1.bf16.xpose.msra.mxu0 0
        %1066 = vmatprep.subr.bf16.mxu0 0
        %1067 = vmatpush1.bf16.xpose.msra.mxu0 0
        %1068 = vmatprep.subr.bf16.mxu0 0
        %1069 = vmatpush1.bf16.xpose.msra.mxu0 0
        %1070 = vmatprep.mubr.bf16.mxu0 0
        %1071 = vmatmul.mubr.bf16.gmra.mrb[0].mxu0 %v981
        %v1072 = vpop.f32.mrb[0].mxu0
        %v1073 = vadd.f32 %v1033, %v1072
        %v1074 = vpop.f32.mrb[0].mxu0
        %v1075 = vpop.f32.mrb[0].mxu0
        %v1076 = vpop.f32.mrb[0].mxu0
        %1077 = vdwg.mxu0
        %v1078 = vsel %vm751, %v1073, -inf
        %1079 = vmax.xlane.f32.xlu0 %v1078
        %v1080 = vpop.xlane.xlu0 %1079
        %v1081 = vsub.f32 %v1073, %v1080
        %v1082 = vmul.f32 %v1081, 1.442695
        %v1083 = vpow.pop %v1082
        %v1084 = vsel %vm751, %v1083, 0.0
        %1085 = vadd.xlane.f32.xlu0 %v1084
        %v1086 = vpop.xlane.xlu0 %1085
        %v1087 = vrcp.pop %v1086
        %v1088 = vmul.f32 %v1083, %v1087
        %v1089 = vpack.c.bf16 %v1088, %v1088
        %v1091 = vunpack.c.l.b16 %v685
        %v1092 = vpack.c.b16 %v1091, %v1091
        %1093 = vrot.lane.b32.xlu0 %v1092, 120
        %v1094 = vpop.permute.xlu0 %1093
        %v1096 = vsel %vm751, %v1089, 0
        %v1099 = vsel %vm884, %v1094, 0
        %1101 = vmatprep.subr.bf16.mxu0 0
        %1102 = vmatpush1.bf16.msra.mxu0 %v1099
        %1103 = vmatprep.subr.bf16.mxu0 0
        %1104 = vmatpush1.bf16.msra.mxu0 0
        %1105 = vmatprep.subr.bf16.mxu0 0
        %1106 = vmatpush1.bf16.msra.mxu0 0
        %1107 = vmatprep.subr.bf16.mxu0 0
        %1108 = vmatpush1.bf16.msra.mxu0 0
        %1109 = vmatprep.subr.bf16.mxu0 0
        %1110 = vmatpush1.bf16.msra.mxu0 0
        %1111 = vmatprep.subr.bf16.mxu0 0
        %1112 = vmatpush1.bf16.msra.mxu0 0
        %1113 = vmatprep.subr.bf16.mxu0 0
        %1114 = vmatpush1.bf16.msra.mxu0 0
        %1115 = vmatprep.subr.bf16.mxu0 0
        %1116 = vmatpush1.bf16.msra.mxu0 0
        %1117 = vmatprep.subr.bf16.mxu0 0
        %1118 = vmatpush1.bf16.msra.mxu0 0
        %1119 = vmatprep.subr.bf16.mxu0 0
        %1120 = vmatpush1.bf16.msra.mxu0 0
        %1121 = vmatprep.subr.bf16.mxu0 0
        %1122 = vmatpush1.bf16.msra.mxu0 0
        %1123 = vmatprep.subr.bf16.mxu0 0
        %1124 = vmatpush1.bf16.msra.mxu0 0
        %1125 = vmatprep.subr.bf16.mxu0 0
        %1126 = vmatpush1.bf16.msra.mxu0 0
        %1127 = vmatprep.subr.bf16.mxu0 0
        %1128 = vmatpush1.bf16.msra.mxu0 0
        %1129 = vmatprep.subr.bf16.mxu0 0
        %1130 = vmatpush1.bf16.msra.mxu0 0
        %1131 = vmatprep.subr.bf16.mxu0 0
        %1132 = vmatpush1.bf16.msra.mxu0 0
        %1133 = vmatprep.mubr.bf16.mxu0 0
        %1134 = vmatmul.mubr.bf16.gmra.mrb[0].mxu0 %v1096
        %v1135 = vpop.f32.mrb[0].mxu0
        %v1136 = vadd.f32 0.0, %v1135
        %v1137 = vpop.f32.mrb[0].mxu0
        %v1138 = vpop.f32.mrb[0].mxu0
        %v1139 = vpop.f32.mrb[0].mxu0
        %1140 = vdwg.mxu0
        %v1141 = vpack.c.bf16 %v1136, %v1136
        %v1142 = vld [vmem:[%s6 + $0x4] sm:$0xf]
        %v1144 = vsel %vm751, %v1141, 0
        %v1147 = vsel %vm884, %v1142, 0
        %1149 = vmatprep.subr.bf16.mxu0 0
        %1150 = vmatpush1.bf16.msra.mxu0 %v1147
        %1151 = vmatprep.subr.bf16.mxu0 0
        %1152 = vmatpush1.bf16.msra.mxu0 0
        %1153 = vmatprep.subr.bf16.mxu0 0
        %1154 = vmatpush1.bf16.msra.mxu0 0
        %1155 = vmatprep.subr.bf16.mxu0 0
        %1156 = vmatpush1.bf16.msra.mxu0 0
        %1157 = vmatprep.subr.bf16.mxu0 0
        %1158 = vmatpush1.bf16.msra.mxu0 0
        %1159 = vmatprep.subr.bf16.mxu0 0
        %1160 = vmatpush1.bf16.msra.mxu0 0
        %1161 = vmatprep.subr.bf16.mxu0 0
        %1162 = vmatpush1.bf16.msra.mxu0 0
        %1163 = vmatprep.subr.bf16.mxu0 0
        %1164 = vmatpush1.bf16.msra.mxu0 0
        %1165 = vmatprep.subr.bf16.mxu0 0
        %1166 = vmatpush1.bf16.msra.mxu0 0
        %1167 = vmatprep.subr.bf16.mxu0 0
        %1168 = vmatpush1.bf16.msra.mxu0 0
        %1169 = vmatprep.subr.bf16.mxu0 0
        %1170 = vmatpush1.bf16.msra.mxu0 0
        %1171 = vmatprep.subr.bf16.mxu0 0
        %1172 = vmatpush1.bf16.msra.mxu0 0
        %1173 = vmatprep.subr.bf16.mxu0 0
        %1174 = vmatpush1.bf16.msra.mxu0 0
        %1175 = vmatprep.subr.bf16.mxu0 0
        %1176 = vmatpush1.bf16.msra.mxu0 0
        %1177 = vmatprep.subr.bf16.mxu0 0
        %1178 = vmatpush1.bf16.msra.mxu0 0
        %1179 = vmatprep.subr.bf16.mxu0 0
        %1180 = vmatpush1.bf16.msra.mxu0 0
        %1181 = vmatprep.mubr.bf16.mxu0 0
        %1182 = vmatmul.mubr.bf16.gmra.mrb[0].mxu0 %v1144
        %v1183 = vpop.f32.mrb[0].mxu0
        %v1184 = vadd.f32 0.0, %v1183
        %v1185 = vpop.f32.mrb[0].mxu0
        %v1186 = vpop.f32.mrb[0].mxu0
        %v1187 = vpop.f32.mrb[0].mxu0
        %1188 = vdwg.mxu0
        %v1189 = vadd.f32 %v976, %v1184
        %1190 = vrot.lane.b32.xlu0 %v710, 112
        %v1191 = vpop.permute.xlu0 %1190
        %v1193 = vsel %vm751, %v1191, 0
        %1195 = vmatprep.subr.bf16.mxu0 0
        %1196 = vmatpush1.bf16.xpose.msra.mxu0 %v756
        %1197 = vmatprep.subr.bf16.mxu0 0
        %1198 = vmatpush1.bf16.xpose.msra.mxu0 %v759
        %1199 = vmatprep.subr.bf16.mxu0 0
        %1200 = vmatpush1.bf16.xpose.msra.mxu0 %v762
        %1201 = vmatprep.subr.bf16.mxu0 0
        %1202 = vmatpush1.bf16.xpose.msra.mxu0 %v765
        %1203 = vmatprep.subr.bf16.mxu0 0
        %1204 = vmatpush1.bf16.xpose.msra.mxu0 %v768
        %1205 = vmatprep.subr.bf16.mxu0 0
        %1206 = vmatpush1.bf16.xpose.msra.mxu0 %v771
        %1207 = vmatprep.subr.bf16.mxu0 0
        %1208 = vmatpush1.bf16.xpose.msra.mxu0 %v774
        %1209 = vmatprep.subr.bf16.mxu0 0
        %1210 = vmatpush1.bf16.xpose.msra.mxu0 %v777
        %1211 = vmatprep.subr.bf16.mxu0 0
        %1212 = vmatpush1.bf16.xpose.msra.mxu0 0
        %1213 = vmatprep.subr.bf16.mxu0 0
        %1214 = vmatpush1.bf16.xpose.msra.mxu0 0
        %1215 = vmatprep.subr.bf16.mxu0 0
        %1216 = vmatpush1.bf16.xpose.msra.mxu0 0
        %1217 = vmatprep.subr.bf16.mxu0 0
        %1218 = vmatpush1.bf16.xpose.msra.mxu0 0
        %1219 = vmatprep.subr.bf16.mxu0 0
        %1220 = vmatpush1.bf16.xpose.msra.mxu0 0
        %1221 = vmatprep.subr.bf16.mxu0 0
        %1222 = vmatpush1.bf16.xpose.msra.mxu0 0
        %1223 = vmatprep.subr.bf16.mxu0 0
        %1224 = vmatpush1.bf16.xpose.msra.mxu0 0
        %1225 = vmatprep.subr.bf16.mxu0 0
        %1226 = vmatpush1.bf16.xpose.msra.mxu0 0
        %1227 = vmatprep.mubr.bf16.mxu0 0
        %1228 = vmatmul.mubr.bf16.gmra.mrb[0].mxu0 %v1193
        %v1229 = vpop.f32.mrb[0].mxu0
        %v1230 = vadd.f32 0.0, %v1229
        %v1231 = vpop.f32.mrb[0].mxu0
        %v1232 = vpop.f32.mrb[0].mxu0
        %v1233 = vpop.f32.mrb[0].mxu0
        %1234 = vdwg.mxu0
        %1236 = vrot.lane.b32.xlu0 %v1230, 256
        %v1237 = vpop.permute.xlu0 %1236
        %1238 = vrot.lane.b32.xlu0 %v1028, 112
        %v1239 = vpop.permute.xlu0 %1238
        %1241 = vrot.lane.b32.xlu0 %v1237, 121
        %v1242 = vpop.permute.xlu0 %1241
        %v1245 = vsel %vm751, %v1239, 0
        %1247 = vmatprep.subr.bf16.mxu0 0
        %1248 = vmatpush1.bf16.xpose.msra.mxu0 %v1245
        %1249 = vmatprep.subr.bf16.mxu0 0
        %1250 = vmatpush1.bf16.xpose.msra.mxu0 0
        %1251 = vmatprep.subr.bf16.mxu0 0
        %1252 = vmatpush1.bf16.xpose.msra.mxu0 0
        %1253 = vmatprep.subr.bf16.mxu0 0
        %1254 = vmatpush1.bf16.xpose.msra.mxu0 0
        %1255 = vmatprep.subr.bf16.mxu0 0
        %1256 = vmatpush1.bf16.xpose.msra.mxu0 0
        %1257 = vmatprep.subr.bf16.mxu0 0
        %1258 = vmatpush1.bf16.xpose.msra.mxu0 0
        %1259 = vmatprep.subr.bf16.mxu0 0
        %1260 = vmatpush1.bf16.xpose.msra.mxu0 0
        %1261 = vmatprep.subr.bf16.mxu0 0
        %1262 = vmatpush1.bf16.xpose.msra.mxu0 0
        %1263 = vmatprep.subr.bf16.mxu0 0
        %1264 = vmatpush1.bf16.xpose.msra.mxu0 0
        %1265 = vmatprep.subr.bf16.mxu0 0
        %1266 = vmatpush1.bf16.xpose.msra.mxu0 0
        %1267 = vmatprep.subr.bf16.mxu0 0
        %1268 = vmatpush1.bf16.xpose.msra.mxu0 0
        %1269 = vmatprep.subr.bf16.mxu0 0
        %1270 = vmatpush1.bf16.xpose.msra.mxu0 0
        %1271 = vmatprep.subr.bf16.mxu0 0
        %1272 = vmatpush1.bf16.xpose.msra.mxu0 0
        %1273 = vmatprep.subr.bf16.mxu0 0
        %1274 = vmatpush1.bf16.xpose.msra.mxu0 0
        %1275 = vmatprep.subr.bf16.mxu0 0
        %1276 = vmatpush1.bf16.xpose.msra.mxu0 0
        %1277 = vmatprep.subr.bf16.mxu0 0
        %1278 = vmatpush1.bf16.xpose.msra.mxu0 0
        %1279 = vmatprep.mubr.bf16.mxu0 0
        %1280 = vmatmul.mubr.bf16.gmra.mrb[0].mxu0 %v1193
        %v1281 = vpop.f32.mrb[0].mxu0
        %v1282 = vadd.f32 %v1242, %v1281
        %v1283 = vpop.f32.mrb[0].mxu0
        %v1284 = vpop.f32.mrb[0].mxu0
        %v1285 = vpop.f32.mrb[0].mxu0
        %1286 = vdwg.mxu0
        %v1287 = vsel %vm751, %v1282, -inf
        %1288 = vmax.xlane.f32.xlu0 %v1287
        %v1289 = vpop.xlane.xlu0 %1288
        %v1290 = vsub.f32 %v1282, %v1289
        %v1291 = vmul.f32 %v1290, 1.442695
        %v1292 = vpow.pop %v1291
        %v1293 = vsel %vm751, %v1292, 0.0
        %1294 = vadd.xlane.f32.xlu0 %v1293
        %v1295 = vpop.xlane.xlu0 %1294
        %v1296 = vrcp.pop %v1295
        %v1297 = vmul.f32 %v1292, %v1296
        %v1298 = vpack.c.bf16 %v1297, %v1297
        %1299 = vrot.lane.b32.xlu0 %v1092, 112
        %v1300 = vpop.permute.xlu0 %1299
        %v1302 = vsel %vm751, %v1298, 0
        %v1305 = vsel %vm884, %v1300, 0
        %1307 = vmatprep.subr.bf16.mxu0 0
        %1308 = vmatpush1.bf16.msra.mxu0 %v1305
        %1309 = vmatprep.subr.bf16.mxu0 0
        %1310 = vmatpush1.bf16.msra.mxu0 0
        %1311 = vmatprep.subr.bf16.mxu0 0
        %1312 = vmatpush1.bf16.msra.mxu0 0
        %1313 = vmatprep.subr.bf16.mxu0 0
        %1314 = vmatpush1.bf16.msra.mxu0 0
        %1315 = vmatprep.subr.bf16.mxu0 0
        %1316 = vmatpush1.bf16.msra.mxu0 0
        %1317 = vmatprep.subr.bf16.mxu0 0
        %1318 = vmatpush1.bf16.msra.mxu0 0
        %1319 = vmatprep.subr.bf16.mxu0 0
        %1320 = vmatpush1.bf16.msra.mxu0 0
        %1321 = vmatprep.subr.bf16.mxu0 0
        %1322 = vmatpush1.bf16.msra.mxu0 0
        %1323 = vmatprep.subr.bf16.mxu0 0
        %1324 = vmatpush1.bf16.msra.mxu0 0
        %1325 = vmatprep.subr.bf16.mxu0 0
        %1326 = vmatpush1.bf16.msra.mxu0 0
        %1327 = vmatprep.subr.bf16.mxu0 0
        %1328 = vmatpush1.bf16.msra.mxu0 0
        %1329 = vmatprep.subr.bf16.mxu0 0
        %1330 = vmatpush1.bf16.msra.mxu0 0
        %1331 = vmatprep.subr.bf16.mxu0 0
        %1332 = vmatpush1.bf16.msra.mxu0 0
        %1333 = vmatprep.subr.bf16.mxu0 0
        %1334 = vmatpush1.bf16.msra.mxu0 0
        %1335 = vmatprep.subr.bf16.mxu0 0
        %1336 = vmatpush1.bf16.msra.mxu0 0
        %1337 = vmatprep.subr.bf16.mxu0 0
        %1338 = vmatpush1.bf16.msra.mxu0 0
        %1339 = vmatprep.mubr.bf16.mxu0 0
        %1340 = vmatmul.mubr.bf16.gmra.mrb[0].mxu0 %v1302
        %v1341 = vpop.f32.mrb[0].mxu0
        %v1342 = vadd.f32 0.0, %v1341
        %v1343 = vpop.f32.mrb[0].mxu0
        %v1344 = vpop.f32.mrb[0].mxu0
        %v1345 = vpop.f32.mrb[0].mxu0
        %1346 = vdwg.mxu0
        %v1347 = vpack.c.bf16 %v1342, %v1342
        %v1348 = vld [vmem:[%s6 + $0x8] sm:$0xf]
        %v1350 = vsel %vm751, %v1347, 0
        %v1353 = vsel %vm884, %v1348, 0
        %1355 = vmatprep.subr.bf16.mxu0 0
        %1356 = vmatpush1.bf16.msra.mxu0 %v1353
        %1357 = vmatprep.subr.bf16.mxu0 0
        %1358 = vmatpush1.bf16.msra.mxu0 0
        %1359 = vmatprep.subr.bf16.mxu0 0
        %1360 = vmatpush1.bf16.msra.mxu0 0
        %1361 = vmatprep.subr.bf16.mxu0 0
        %1362 = vmatpush1.bf16.msra.mxu0 0
        %1363 = vmatprep.subr.bf16.mxu0 0
        %1364 = vmatpush1.bf16.msra.mxu0 0
        %1365 = vmatprep.subr.bf16.mxu0 0
        %1366 = vmatpush1.bf16.msra.mxu0 0
        %1367 = vmatprep.subr.bf16.mxu0 0
        %1368 = vmatpush1.bf16.msra.mxu0 0
        %1369 = vmatprep.subr.bf16.mxu0 0
        %1370 = vmatpush1.bf16.msra.mxu0 0
        %1371 = vmatprep.subr.bf16.mxu0 0
        %1372 = vmatpush1.bf16.msra.mxu0 0
        %1373 = vmatprep.subr.bf16.mxu0 0
        %1374 = vmatpush1.bf16.msra.mxu0 0
        %1375 = vmatprep.subr.bf16.mxu0 0
        %1376 = vmatpush1.bf16.msra.mxu0 0
        %1377 = vmatprep.subr.bf16.mxu0 0
        %1378 = vmatpush1.bf16.msra.mxu0 0
        %1379 = vmatprep.subr.bf16.mxu0 0
        %1380 = vmatpush1.bf16.msra.mxu0 0
        %1381 = vmatprep.subr.bf16.mxu0 0
        %1382 = vmatpush1.bf16.msra.mxu0 0
        %1383 = vmatprep.subr.bf16.mxu0 0
        %1384 = vmatpush1.bf16.msra.mxu0 0
        %1385 = vmatprep.subr.bf16.mxu0 0
        %1386 = vmatpush1.bf16.msra.mxu0 0
        %1387 = vmatprep.mubr.bf16.mxu0 0
        %1388 = vmatmul.mubr.bf16.gmra.mrb[0].mxu0 %v1350
        %v1389 = vpop.f32.mrb[0].mxu0
        %v1390 = vadd.f32 0.0, %v1389
        %v1391 = vpop.f32.mrb[0].mxu0
        %v1392 = vpop.f32.mrb[0].mxu0
        %v1393 = vpop.f32.mrb[0].mxu0
        %1394 = vdwg.mxu0
        %v1395 = vadd.f32 %v1189, %v1390
        %1396 = vrot.lane.b32.xlu0 %v710, 104
        %v1397 = vpop.permute.xlu0 %1396
        %v1399 = vsel %vm751, %v1397, 0
        %1401 = vmatprep.subr.bf16.mxu0 0
        %1402 = vmatpush1.bf16.xpose.msra.mxu0 %v756
        %1403 = vmatprep.subr.bf16.mxu0 0
        %1404 = vmatpush1.bf16.xpose.msra.mxu0 %v759
        %1405 = vmatprep.subr.bf16.mxu0 0
        %1406 = vmatpush1.bf16.xpose.msra.mxu0 %v762
        %1407 = vmatprep.subr.bf16.mxu0 0
        %1408 = vmatpush1.bf16.xpose.msra.mxu0 %v765
        %1409 = vmatprep.subr.bf16.mxu0 0
        %1410 = vmatpush1.bf16.xpose.msra.mxu0 %v768
        %1411 = vmatprep.subr.bf16.mxu0 0
        %1412 = vmatpush1.bf16.xpose.msra.mxu0 %v771
        %1413 = vmatprep.subr.bf16.mxu0 0
        %1414 = vmatpush1.bf16.xpose.msra.mxu0 %v774
        %1415 = vmatprep.subr.bf16.mxu0 0
        %1416 = vmatpush1.bf16.xpose.msra.mxu0 %v777
        %1417 = vmatprep.subr.bf16.mxu0 0
        %1418 = vmatpush1.bf16.xpose.msra.mxu0 0
        %1419 = vmatprep.subr.bf16.mxu0 0
        %1420 = vmatpush1.bf16.xpose.msra.mxu0 0
        %1421 = vmatprep.subr.bf16.mxu0 0
        %1422 = vmatpush1.bf16.xpose.msra.mxu0 0
        %1423 = vmatprep.subr.bf16.mxu0 0
        %1424 = vmatpush1.bf16.xpose.msra.mxu0 0
        %1425 = vmatprep.subr.bf16.mxu0 0
        %1426 = vmatpush1.bf16.xpose.msra.mxu0 0
        %1427 = vmatprep.subr.bf16.mxu0 0
        %1428 = vmatpush1.bf16.xpose.msra.mxu0 0
        %1429 = vmatprep.subr.bf16.mxu0 0
        %1430 = vmatpush1.bf16.xpose.msra.mxu0 0
        %1431 = vmatprep.subr.bf16.mxu0 0
        %1432 = vmatpush1.bf16.xpose.msra.mxu0 0
        %1433 = vmatprep.mubr.bf16.mxu0 0
        %1434 = vmatmul.mubr.bf16.gmra.mrb[0].mxu0 %v1399
        %v1435 = vpop.f32.mrb[0].mxu0
        %v1436 = vadd.f32 0.0, %v1435
        %v1437 = vpop.f32.mrb[0].mxu0
        %v1438 = vpop.f32.mrb[0].mxu0
        %v1439 = vpop.f32.mrb[0].mxu0
        %1440 = vdwg.mxu0
        %1442 = vrot.lane.b32.xlu0 %v1436, 256
        %v1443 = vpop.permute.xlu0 %1442
        %1444 = vrot.lane.b32.xlu0 %v1028, 104
        %v1445 = vpop.permute.xlu0 %1444
        %1447 = vrot.lane.b32.xlu0 %v1443, 121
        %v1448 = vpop.permute.xlu0 %1447
        %v1451 = vsel %vm751, %v1445, 0
        %1453 = vmatprep.subr.bf16.mxu0 0
        %1454 = vmatpush1.bf16.xpose.msra.mxu0 %v1451
        %1455 = vmatprep.subr.bf16.mxu0 0
        %1456 = vmatpush1.bf16.xpose.msra.mxu0 0
        %1457 = vmatprep.subr.bf16.mxu0 0
        %1458 = vmatpush1.bf16.xpose.msra.mxu0 0
        %1459 = vmatprep.subr.bf16.mxu0 0
        %1460 = vmatpush1.bf16.xpose.msra.mxu0 0
        %1461 = vmatprep.subr.bf16.mxu0 0
        %1462 = vmatpush1.bf16.xpose.msra.mxu0 0
        %1463 = vmatprep.subr.bf16.mxu0 0
        %1464 = vmatpush1.bf16.xpose.msra.mxu0 0
        %1465 = vmatprep.subr.bf16.mxu0 0
        %1466 = vmatpush1.bf16.xpose.msra.mxu0 0
        %1467 = vmatprep.subr.bf16.mxu0 0
        %1468 = vmatpush1.bf16.xpose.msra.mxu0 0
        %1469 = vmatprep.subr.bf16.mxu0 0
        %1470 = vmatpush1.bf16.xpose.msra.mxu0 0
        %1471 = vmatprep.subr.bf16.mxu0 0
        %1472 = vmatpush1.bf16.xpose.msra.mxu0 0
        %1473 = vmatprep.subr.bf16.mxu0 0
        %1474 = vmatpush1.bf16.xpose.msra.mxu0 0
        %1475 = vmatprep.subr.bf16.mxu0 0
        %1476 = vmatpush1.bf16.xpose.msra.mxu0 0
        %1477 = vmatprep.subr.bf16.mxu0 0
        %1478 = vmatpush1.bf16.xpose.msra.mxu0 0
        %1479 = vmatprep.subr.bf16.mxu0 0
        %1480 = vmatpush1.bf16.xpose.msra.mxu0 0
        %1481 = vmatprep.subr.bf16.mxu0 0
        %1482 = vmatpush1.bf16.xpose.msra.mxu0 0
        %1483 = vmatprep.subr.bf16.mxu0 0
        %1484 = vmatpush1.bf16.xpose.msra.mxu0 0
        %1485 = vmatprep.mubr.bf16.mxu0 0
        %1486 = vmatmul.mubr.bf16.gmra.mrb[0].mxu0 %v1399
        %v1487 = vpop.f32.mrb[0].mxu0
        %v1488 = vadd.f32 %v1448, %v1487
        %v1489 = vpop.f32.mrb[0].mxu0
        %v1490 = vpop.f32.mrb[0].mxu0
        %v1491 = vpop.f32.mrb[0].mxu0
        %1492 = vdwg.mxu0
        %v1493 = vsel %vm751, %v1488, -inf
        %1494 = vmax.xlane.f32.xlu0 %v1493
        %v1495 = vpop.xlane.xlu0 %1494
        %v1496 = vsub.f32 %v1488, %v1495
        %v1497 = vmul.f32 %v1496, 1.442695
        %v1498 = vpow.pop %v1497
        %v1499 = vsel %vm751, %v1498, 0.0
        %1500 = vadd.xlane.f32.xlu0 %v1499
        %v1501 = vpop.xlane.xlu0 %1500
        %v1502 = vrcp.pop %v1501
        %v1503 = vmul.f32 %v1498, %v1502
        %v1504 = vpack.c.bf16 %v1503, %v1503
        %1505 = vrot.lane.b32.xlu0 %v1092, 104
        %v1506 = vpop.permute.xlu0 %1505
        %v1508 = vsel %vm751, %v1504, 0
        %v1511 = vsel %vm884, %v1506, 0
        %1513 = vmatprep.subr.bf16.mxu0 0
        %1514 = vmatpush1.bf16.msra.mxu0 %v1511
        %1515 = vmatprep.subr.bf16.mxu0 0
        %1516 = vmatpush1.bf16.msra.mxu0 0
        %1517 = vmatprep.subr.bf16.mxu0 0
        %1518 = vmatpush1.bf16.msra.mxu0 0
        %1519 = vmatprep.subr.bf16.mxu0 0
        %1520 = vmatpush1.bf16.msra.mxu0 0
        %1521 = vmatprep.subr.bf16.mxu0 0
        %1522 = vmatpush1.bf16.msra.mxu0 0
        %1523 = vmatprep.subr.bf16.mxu0 0
        %1524 = vmatpush1.bf16.msra.mxu0 0
        %1525 = vmatprep.subr.bf16.mxu0 0
        %1526 = vmatpush1.bf16.msra.mxu0 0
        %1527 = vmatprep.subr.bf16.mxu0 0
        %1528 = vmatpush1.bf16.msra.mxu0 0
        %1529 = vmatprep.subr.bf16.mxu0 0
        %1530 = vmatpush1.bf16.msra.mxu0 0
        %1531 = vmatprep.subr.bf16.mxu0 0
        %1532 = vmatpush1.bf16.msra.mxu0 0
        %1533 = vmatprep.subr.bf16.mxu0 0
        %1534 = vmatpush1.bf16.msra.mxu0 0
        %1535 = vmatprep.subr.bf16.mxu0 0
        %1536 = vmatpush1.bf16.msra.mxu0 0
        %1537 = vmatprep.subr.bf16.mxu0 0
        %1538 = vmatpush1.bf16.msra.mxu0 0
        %1539 = vmatprep.subr.bf16.mxu0 0
        %1540 = vmatpush1.bf16.msra.mxu0 0
        %1541 = vmatprep.subr.bf16.mxu0 0
        %1542 = vmatpush1.bf16.msra.mxu0 0
        %1543 = vmatprep.subr.bf16.mxu0 0
        %1544 = vmatpush1.bf16.msra.mxu0 0
        %1545 = vmatprep.mubr.bf16.mxu0 0
        %1546 = vmatmul.mubr.bf16.gmra.mrb[0].mxu0 %v1508
        %v1547 = vpop.f32.mrb[0].mxu0
        %v1548 = vadd.f32 0.0, %v1547
        %v1549 = vpop.f32.mrb[0].mxu0
        %v1550 = vpop.f32.mrb[0].mxu0
        %v1551 = vpop.f32.mrb[0].mxu0
        %1552 = vdwg.mxu0
        %v1553 = vpack.c.bf16 %v1548, %v1548
        %v1554 = vld [vmem:[%s6 + $0xc] sm:$0xf]
        %v1556 = vsel %vm751, %v1553, 0
        %v1559 = vsel %vm884, %v1554, 0
        %1561 = vmatprep.subr.bf16.mxu0 0
        %1562 = vmatpush1.bf16.msra.mxu0 %v1559
        %1563 = vmatprep.subr.bf16.mxu0 0
        %1564 = vmatpush1.bf16.msra.mxu0 0
        %1565 = vmatprep.subr.bf16.mxu0 0
        %1566 = vmatpush1.bf16.msra.mxu0 0
        %1567 = vmatprep.subr.bf16.mxu0 0
        %1568 = vmatpush1.bf16.msra.mxu0 0
        %1569 = vmatprep.subr.bf16.mxu0 0
        %1570 = vmatpush1.bf16.msra.mxu0 0
        %1571 = vmatprep.subr.bf16.mxu0 0
        %1572 = vmatpush1.bf16.msra.mxu0 0
        %1573 = vmatprep.subr.bf16.mxu0 0
        %1574 = vmatpush1.bf16.msra.mxu0 0
        %1575 = vmatprep.subr.bf16.mxu0 0
        %1576 = vmatpush1.bf16.msra.mxu0 0
        %1577 = vmatprep.subr.bf16.mxu0 0
        %1578 = vmatpush1.bf16.msra.mxu0 0
        %1579 = vmatprep.subr.bf16.mxu0 0
        %1580 = vmatpush1.bf16.msra.mxu0 0
        %1581 = vmatprep.subr.bf16.mxu0 0
        %1582 = vmatpush1.bf16.msra.mxu0 0
        %1583 = vmatprep.subr.bf16.mxu0 0
        %1584 = vmatpush1.bf16.msra.mxu0 0
        %1585 = vmatprep.subr.bf16.mxu0 0
        %1586 = vmatpush1.bf16.msra.mxu0 0
        %1587 = vmatprep.subr.bf16.mxu0 0
        %1588 = vmatpush1.bf16.msra.mxu0 0
        %1589 = vmatprep.subr.bf16.mxu0 0
        %1590 = vmatpush1.bf16.msra.mxu0 0
        %1591 = vmatprep.subr.bf16.mxu0 0
        %1592 = vmatpush1.bf16.msra.mxu0 0
        %1593 = vmatprep.mubr.bf16.mxu0 0
        %1594 = vmatmul.mubr.bf16.gmra.mrb[0].mxu0 %v1556
        %v1595 = vpop.f32.mrb[0].mxu0
        %v1596 = vadd.f32 0.0, %v1595
        %v1597 = vpop.f32.mrb[0].mxu0
        %v1598 = vpop.f32.mrb[0].mxu0
        %v1599 = vpop.f32.mrb[0].mxu0
        %1600 = vdwg.mxu0
        %v1601 = vadd.f32 %v1395, %v1596
        %v1602 = vadd.f32 %v615, %v1601
        %v1603 = vld [vmem:[%s8] sm:$0x1]
        %v1604 = vld [vmem:[%s9] sm:$0x1]
        %v1605 = vsel %vm640, %v1602, 0.0
        %1606 = vadd.xlane.f32.xlu0 %v1605
        %v1607 = vpop.xlane.xlu0 %1606
        %v1608 = vrcp.pop 32.0
        %v1609 = vmul.f32 %v1607, %v1608
        %v1610 = vsub.f32 %v1602, %v1609
        %v1611 = vmul.f32 %v1610, %v1610
        %v1612 = vsel %vm640, %v1611, 0.0
        %1613 = vadd.xlane.f32.xlu0 %v1612
        %v1614 = vpop.xlane.xlu0 %1613
        %v1615 = vmul.f32 %v1614, %v1608
        %v1616 = vadd.f32 %v1615, 1e-06
        %v1617 = vrsqrt.pop %v1616
        %v1618 = vmul.f32 %v1610, %v1617
        %v1620 = vlaneseq
        %v1621 = vshrl.u32 %v1620, 7
        %v1622 = vsub.s32 0, %v1621
        %v1623 = vrot.slane %v1603, %v1622
        %v1625 = vmul.f32 %v1618, %v1623
        %v1627 = vlaneseq
        %v1628 = vshrl.u32 %v1627, 7
        %v1629 = vsub.s32 0, %v1628
        %v1630 = vrot.slane %v1604, %v1629
        %v1632 = vadd.f32 %v1625, %v1630
        %v1633 = vpack.c.bf16 %v1632, %v1632
        %v1634 = vld [vmem:[%s10] sm:$0xf]
        %v1635 = vld [vmem:[%s10 + $0x4] sm:$0xf]
        %v1636 = vld [vmem:[%s10 + $0x8] sm:$0xf]
        %v1637 = vld [vmem:[%s10 + $0xc] sm:$0xf]
        %v1638 = vld [vmem:[%s11] sm:$0x1]
        %v1640 = vlaneseq
        %v1641 = vshrl.u32 %v1640, 7
        %v1642 = vsub.s32 0, %v1641
        %v1643 = vrot.slane %v1638, %v1642
        %v1649 = vunpack.c.l.b16 %v1634
        %v1650 = vunpack.c.l.b16 %v1635
        %v1651 = vunpack.c.l.b16 %v1636
        %v1652 = vunpack.c.l.b16 %v1637
        %v1653 = vpack.c.b16 %v1650, %v1649
        %v1654 = vpack.c.b16 %v1652, %v1651
        %v1658 = vsel %vm640, %v1633, 0
        %1660 = vmatprep.subr.bf16.mxu0 0
        %1661 = vmatpush1.bf16.msra.mxu0 %v1653
        %1662 = vmatprep.subr.bf16.mxu0 0
        %1663 = vmatpush1.bf16.msra.mxu0 %v1654
        %1664 = vmatprep.subr.bf16.mxu0 0
        %1665 = vmatpush1.bf16.msra.mxu0 0
        %1666 = vmatprep.subr.bf16.mxu0 0
        %1667 = vmatpush1.bf16.msra.mxu0 0
        %1668 = vmatprep.subr.bf16.mxu0 0
        %1669 = vmatpush1.bf16.msra.mxu0 0
        %1670 = vmatprep.subr.bf16.mxu0 0
        %1671 = vmatpush1.bf16.msra.mxu0 0
        %1672 = vmatprep.subr.bf16.mxu0 0
        %1673 = vmatpush1.bf16.msra.mxu0 0
        %1674 = vmatprep.subr.bf16.mxu0 0
        %1675 = vmatpush1.bf16.msra.mxu0 0
        %1676 = vmatprep.subr.bf16.mxu0 0
        %1677 = vmatpush1.bf16.msra.mxu0 0
        %1678 = vmatprep.subr.bf16.mxu0 0
        %1679 = vmatpush1.bf16.msra.mxu0 0
        %1680 = vmatprep.subr.bf16.mxu0 0
        %1681 = vmatpush1.bf16.msra.mxu0 0
        %1682 = vmatprep.subr.bf16.mxu0 0
        %1683 = vmatpush1.bf16.msra.mxu0 0
        %1684 = vmatprep.subr.bf16.mxu0 0
        %1685 = vmatpush1.bf16.msra.mxu0 0
        %1686 = vmatprep.subr.bf16.mxu0 0
        %1687 = vmatpush1.bf16.msra.mxu0 0
        %1688 = vmatprep.subr.bf16.mxu0 0
        %1689 = vmatpush1.bf16.msra.mxu0 0
        %1690 = vmatprep.subr.bf16.mxu0 0
        %1691 = vmatpush1.bf16.msra.mxu0 0
        %1692 = vmatprep.mubr.bf16.mxu0 0
        %1693 = vmatmul.mubr.bf16.gmra.mrb[0].mxu0 %v1658
        %v1694 = vpop.f32.mrb[0].mxu0
        %v1695 = vadd.f32 %v1643, %v1694
        %v1696 = vpop.f32.mrb[0].mxu0
        %v1697 = vpop.f32.mrb[0].mxu0
        %v1698 = vpop.f32.mrb[0].mxu0
        %1699 = vdwg.mxu0
        %v1700 = vmax.f32 %v1695, 0.0
        %v1701 = vpack.c.bf16 %v1700, %v1700
        %v1702 = vld [vmem:[%s12] sm:$0xf]
        %v1703 = vld [vmem:[%s12 + $0x4] sm:$0xf]
        %v1704 = vld [vmem:[%s12 + $0x8] sm:$0xf]
        %v1705 = vld [vmem:[%s12 + $0xc] sm:$0xf]
        %v1706 = vld [vmem:[%s12 + $0x10] sm:$0xf]
        %v1707 = vld [vmem:[%s12 + $0x14] sm:$0xf]
        %v1708 = vld [vmem:[%s12 + $0x18] sm:$0xf]
        %v1709 = vld [vmem:[%s12 + $0x1c] sm:$0xf]
        %v1710 = vld [vmem:[%s13] sm:$0x1]
        %v1712 = vlaneseq
        %v1713 = vshrl.u32 %v1712, 7
        %v1714 = vsub.s32 0, %v1713
        %v1715 = vrot.slane %v1710, %v1714
        %v1725 = vunpack.c.l.b16 %v1702
        %v1726 = vunpack.c.l.b16 %v1703
        %v1727 = vunpack.c.l.b16 %v1704
        %v1728 = vunpack.c.l.b16 %v1705
        %v1729 = vunpack.c.l.b16 %v1706
        %v1730 = vunpack.c.l.b16 %v1707
        %v1731 = vunpack.c.l.b16 %v1708
        %v1732 = vunpack.c.l.b16 %v1709
        %v1733 = vpack.c.b16 %v1726, %v1725
        %v1734 = vpack.c.b16 %v1728, %v1727
        %v1735 = vpack.c.b16 %v1730, %v1729
        %v1736 = vpack.c.b16 %v1732, %v1731
        %vm1741 = vcmask 523264
        %v1743 = vsel %vm1741, %v1701, 0
        %1745 = vmatprep.subr.bf16.mxu0 0
        %1746 = vmatpush1.bf16.msra.mxu0 %v1733
        %1747 = vmatprep.subr.bf16.mxu0 0
        %1748 = vmatpush1.bf16.msra.mxu0 %v1734
        %1749 = vmatprep.subr.bf16.mxu0 0
        %1750 = vmatpush1.bf16.msra.mxu0 %v1735
        %1751 = vmatprep.subr.bf16.mxu0 0
        %1752 = vmatpush1.bf16.msra.mxu0 %v1736
        %1753 = vmatprep.subr.bf16.mxu0 0
        %1754 = vmatpush1.bf16.msra.mxu0 0
        %1755 = vmatprep.subr.bf16.mxu0 0
        %1756 = vmatpush1.bf16.msra.mxu0 0
        %1757 = vmatprep.subr.bf16.mxu0 0
        %1758 = vmatpush1.bf16.msra.mxu0 0
        %1759 = vmatprep.subr.bf16.mxu0 0
        %1760 = vmatpush1.bf16.msra.mxu0 0
        %1761 = vmatprep.subr.bf16.mxu0 0
        %1762 = vmatpush1.bf16.msra.mxu0 0
        %1763 = vmatprep.subr.bf16.mxu0 0
        %1764 = vmatpush1.bf16.msra.mxu0 0
        %1765 = vmatprep.subr.bf16.mxu0 0
        %1766 = vmatpush1.bf16.msra.mxu0 0
        %1767 = vmatprep.subr.bf16.mxu0 0
        %1768 = vmatpush1.bf16.msra.mxu0 0
        %1769 = vmatprep.subr.bf16.mxu0 0
        %1770 = vmatpush1.bf16.msra.mxu0 0
        %1771 = vmatprep.subr.bf16.mxu0 0
        %1772 = vmatpush1.bf16.msra.mxu0 0
        %1773 = vmatprep.subr.bf16.mxu0 0
        %1774 = vmatpush1.bf16.msra.mxu0 0
        %1775 = vmatprep.subr.bf16.mxu0 0
        %1776 = vmatpush1.bf16.msra.mxu0 0
        %1777 = vmatprep.mubr.bf16.mxu0 0
        %1778 = vmatmul.mubr.bf16.gmra.mrb[0].mxu0 %v1743
        %v1779 = vpop.f32.mrb[0].mxu0
        %v1780 = vadd.f32 %v1715, %v1779
        %v1781 = vpop.f32.mrb[0].mxu0
        %v1782 = vpop.f32.mrb[0].mxu0
        %v1783 = vpop.f32.mrb[0].mxu0
        %1784 = vdwg.mxu0
        %v1785 = vadd.f32 %v1632, %v1780
        %v1786 = vld [vmem:[%s14] sm:$0x1]
        %v1787 = vld [vmem:[%s15] sm:$0x1]
        %v1788 = vsel %vm640, %v1785, 0.0
        %1789 = vadd.xlane.f32.xlu0 %v1788
        %v1790 = vpop.xlane.xlu0 %1789
        %v1791 = vmul.f32 %v1790, %v1608
        %v1792 = vsub.f32 %v1785, %v1791
        %v1793 = vmul.f32 %v1792, %v1792
        %v1794 = vsel %vm640, %v1793, 0.0
        %1795 = vadd.xlane.f32.xlu0 %v1794
        %v1796 = vpop.xlane.xlu0 %1795
        %v1797 = vmul.f32 %v1796, %v1608
        %v1798 = vadd.f32 %v1797, 1e-06
        %v1799 = vrsqrt.pop %v1798
        %v1800 = vmul.f32 %v1792, %v1799
        %v1802 = vlaneseq
        %v1803 = vshrl.u32 %v1802, 7
        %v1804 = vsub.s32 0, %v1803
        %v1805 = vrot.slane %v1786, %v1804
        %v1807 = vmul.f32 %v1800, %v1805
        %v1809 = vlaneseq
        %v1810 = vshrl.u32 %v1809, 7
        %v1811 = vsub.s32 0, %v1810
        %v1812 = vrot.slane %v1787, %v1811
        %v1814 = vadd.f32 %v1807, %v1812
        %1815 = vst.msk [vmem:[%s526] sm:$0xff] %vm640, %v1814
        %s1816 = sand.u32 %s393, 1
        %s1817 = scalar_lea.sflag [#allocation5], %s1816
        %s1818 = sand.u32 %s393, 1
        %s1819 = smul.addr %s1818, 8
        %s1820 = scalar_lea.vmem [#allocation4], %s1819
        // Predicated region
        $region89: #{tpu_custom_call.1} parent=83 // pred_check
          %p1821 = pneg %p403
        $region90: #{tpu_custom_call.1} parent=83 // pred_check_branch
          %1823 = sbr.rel (%p1821) target = $region92
        $region91: #{tpu_custom_call.1} parent=83 // pred_region
          %s1825 = ssub.s32 128, 128
          %1826 = vsyncadd %s1817, %s1825
          %s1827 = sadd.s32 %s35, %s34
          %s1828 = smul.addr %s1827, 128
          %s1829 = scalar_lea.hbm %s16, %s1828
          %s1831 = sshll.u32 %s1820, 4
          %s1832 = int_to_ptr.vmem [resolvable:$true] %s1831
          %1834 = dma.vmem_to_hbm [thread:$0]  %s1832, 128, %s1829, %s1817
        $region92: #{tpu_custom_call.1} parent=83 // pred_fallthru
          _
      $region84: #{tpu_custom_call.1} parent=5 // pred_fallthru
        _
      %p1835 = scmp.le.s32.totalorder 2, %s25
      // Predicated region
      $region93: #{tpu_custom_call.1} parent=5 // pred_check
        %p1836 = pneg %p1835
      $region94: #{tpu_custom_call.1} parent=5 // pred_check_branch
        %1838 = sbr.rel (%p1836) target = $region96
      $region95: #{tpu_custom_call.1} parent=5 // pred_region
        %s1839 = ssub.s32 %s25, 2
        // Predicated region
        $region97: #{tpu_custom_call.1} parent=95 // pred_check
          %p1840 = pneg %p409
        $region98: #{tpu_custom_call.1} parent=95 // pred_check_branch
          %1842 = sbr.rel (%p1840) target = $region100
        $region99: #{tpu_custom_call.1} parent=95 // pred_region
          %s1843 = sand.u32 %s394, 1
          %s1844 = scalar_lea.sflag [#allocation5], %s1843
          %s1845 = sand.u32 %s394, 1
          %s1846 = smul.addr %s1845, 8
          %s1847 = scalar_lea.vmem [#allocation4], %s1846
          %1848 = dma.done %s1844, 128
        $region100: #{tpu_custom_call.1} parent=95 // pred_fallthru
          _
      $region96: #{tpu_custom_call.1} parent=5 // pred_fallthru
        _
    $region6: #{tpu_custom_call.1} parent=1 // loop_footer
      %s29 = sadd.s32 1, %s25
    $region7: #{tpu_custom_call.1} parent=1 // loop_footer_branch
      %24 = sbr.rel target = $region3
    $region8: #{tpu_custom_call.1} parent=1 // loop_exit
      _
    %1849 = vsyncpa [#allocation5], 1
    %s1850 = scalar_lea.sflag [#allocation5], 1
    %1851 = vsyncpa %s1850, 1

</llo_original>
